<compile_context>
chip_gen: v7x
topology: tpu7x:2x2x1
jax: 0.10.0
libtpu: 0.0.40
codegen_flags: <defaults>
</compile_context>

<pallas_src>
import functools
import math

import jax
import jax.numpy as jnp
from jax.experimental import pallas as pl
from jax.experimental.pallas import tpu as pltpu


def _gelu(x, approximate=False):
    if approximate:
        # tanh-approx routes to the EUP slot (cheaper) but changes numerics.
        return jax.nn.gelu(x, approximate=True)
    inv_sqrt2 = jnp.float32(1.0 / math.sqrt(2.0))
    return 0.5 * x * (1.0 + jax.lax.erf(x * inv_sqrt2))


def _layernorm(x, gamma, beta, eps=1e-6):
    mean = jnp.mean(x, axis=-1, keepdims=True)
    var = jnp.mean(jnp.square(x - mean), axis=-1, keepdims=True)
    return (x - mean) * jax.lax.rsqrt(var + eps) * gamma + beta


def mixer_block_kernel(x_ref,
                       pre_g_ref, pre_b_ref, post_g_ref, post_b_ref,
                       tw0_ref, tb0_ref, tw1_ref, tb1_ref,
                       cw0_ref, cb0_ref, cw1_ref, cb1_ref,
                       o_ref,
                       *, matmul_dtype=jnp.float32, approximate_gelu=False):
    # x_ref is a (block_b, S, D) slab of the batch.
    Bb, S, D = x_ref.shape

    def mm(a, b):
        # Optional bf16 operands; accumulation always f32 on the MXU.
        return jnp.dot(a.astype(matmul_dtype), b.astype(matmul_dtype),
                       preferred_element_type=jnp.float32)

    x = x_ref[...].astype(jnp.float32)                             # (Bb, S, D)

    # ---- token-mixing branch: un-batched 2-D matmuls on a (Bb*D, S) slab ---
    xn = _layernorm(x, pre_g_ref[...], pre_b_ref[...])             # (Bb, S, D)
    xt = jnp.swapaxes(xn, -1, -2).reshape(Bb * D, S)               # (Bb*D, S)
    t = _gelu(mm(xt, tw0_ref[...]) + tb0_ref[...], approximate_gelu)   # (Bb*D, T)
    u = mm(t, tw1_ref[...]) + tb1_ref[...]                          # (Bb*D, S)
    u = jnp.swapaxes(u.reshape(Bb, D, S), -1, -2)                   # (Bb, S, D)
    x1 = x + u                                                      # residual

    # ---- channel-mixing branch: one big-M 2-D matmul pair ------------------
    xf = x1.reshape(Bb * S, D)                                      # leading merge (free)
    xn2 = _layernorm(xf, post_g_ref[...], post_b_ref[...])          # (Bb*S, D)
    c = _gelu(mm(xn2, cw0_ref[...]) + cb0_ref[...], approximate_gelu)   # (Bb*S, C)
    c = mm(c, cw1_ref[...]) + cb1_ref[...]                          # (Bb*S, D)
    out = xf + c                                                    # residual

    # Single dense block write (no per-token masked-store loop).
    o_ref[...] = out.reshape(Bb, S, D).astype(o_ref.dtype)


def _single_tensorcore_chip():
    """Best-effort: True on chips with 1 TensorCore per Pallas call (v5e/v6e)."""
    try:
        kind = jax.devices()[0].device_kind.lower()
    except Exception:
        return False
    return any(tag in kind for tag in ("v2", "v3", "v5 lite", "v5e", "v6"))


def _pick_block_b(B, *, want_multi_step):
    """block_b = B (grid of 1) on single-TC chips; else >=2 grid steps."""
    if B <= 1 or not want_multi_step:
        return B
    for bb in range(B // 2, 0, -1):
        if B % bb == 0:
            return bb
    return 1


def mixer_block(x, params, *, block_b=None, vmem_limit_bytes=None,
                matmul_dtype=jnp.float32, approximate_gelu=False):
    B, S, D = x.shape
    T = params["tok_w0"].shape[1]   # tokens_mlp_dim
    C = params["ch_w0"].shape[1]    # channels_mlp_dim

    if block_b is None:
        block_b = _pick_block_b(B, want_multi_step=not _single_tensorcore_chip())
    assert B % block_b == 0
    grid = (B // block_b,)

    def rep(shape):
        # Weights / biases: same (whole) block at every grid step.
        zeros = (0,) * len(shape)
        return pl.BlockSpec(shape, lambda b, _z=zeros: _z)

    in_specs = [
        pl.BlockSpec((block_b, S, D), lambda b: (b, 0, 0)),   # x slab
        rep((1, D)), rep((1, D)),                             # pre-LN gamma, beta
        rep((1, D)), rep((1, D)),                             # post-LN gamma, beta
        rep((S, T)), rep((1, T)),                             # token fc0 W (in,out), b
        rep((T, S)), rep((1, S)),                             # token fc1 W (in,out), b
        rep((D, C)), rep((1, C)),                             # channel fc0 W, b
        rep((C, D)), rep((1, D)),                             # channel fc1 W, b
    ]
    out_spec = pl.BlockSpec((block_b, S, D), lambda b: (b, 0, 0))
    out_shape = jax.ShapeDtypeStruct((B, S, D), x.dtype)

    # Advisory cost estimate for the XLA scheduler (erf actually lowers to a
    # VPU polynomial; the transcendental count here is nominal).
    flops = 4 * B * S * D * (T + C)
    transcendentals = B * (D * T + S * C)
    bytes_accessed = 4 * (2 * B * S * D + 2 * S * T + 2 * D * C
                          + 4 * D + T + S + C + D)
    cost = pl.CostEstimate(flops=flops, transcendentals=transcendentals,
                           bytes_accessed=bytes_accessed)

    kernel = functools.partial(mixer_block_kernel,
                               matmul_dtype=matmul_dtype,
                               approximate_gelu=approximate_gelu)

    return pl.pallas_call(
        kernel,
        out_shape=out_shape,
        grid_spec=pltpu.PrefetchScalarGridSpec(
            num_scalar_prefetch=0,
            grid=grid,
            in_specs=in_specs,
            out_specs=out_spec,
        ),
        compiler_params=pltpu.CompilerParams(
            dimension_semantics=("parallel",),
            vmem_limit_bytes=vmem_limit_bytes),   # raise for realistic Mixer dims
        cost_estimate=cost,
    )(
        x,
        params["pre_g"].reshape(1, D), params["pre_b"].reshape(1, D),
        params["post_g"].reshape(1, D), params["post_b"].reshape(1, D),
        params["tok_w0"], params["tok_b0"].reshape(1, T),
        params["tok_w1"], params["tok_b1"].reshape(1, S),
        params["ch_w0"], params["ch_b0"].reshape(1, C),
        params["ch_w1"], params["ch_b1"].reshape(1, D),
    )


def make_params(key, S, D, T, C):
    """Deterministic synthetic parameters.

    Weights are stored in (in, out) layout so the math is x @ W + b, matching
    PyTorch's y = x @ weight.T + bias.
    """
    ks = jax.random.split(key, 8)
    f32 = jnp.float32
    return {
        "pre_g": jnp.ones((D,), f32),
        "pre_b": jnp.zeros((D,), f32),
        "post_g": jnp.ones((D,), f32),
        "post_b": jnp.zeros((D,), f32),
        "tok_w0": 0.02 * jax.random.normal(ks[0], (S, T), f32),
        "tok_b0": 0.01 * jax.random.normal(ks[1], (T,), f32),
        "tok_w1": 0.02 * jax.random.normal(ks[2], (T, S), f32),
        "tok_b1": 0.01 * jax.random.normal(ks[3], (S,), f32),
        "ch_w0": 0.02 * jax.random.normal(ks[4], (D, C), f32),
        "ch_b0": 0.01 * jax.random.normal(ks[5], (C,), f32),
        "ch_w1": 0.02 * jax.random.normal(ks[6], (C, D), f32),
        "ch_b1": 0.01 * jax.random.normal(ks[7], (D,), f32),
    }


def mixer_block_ref(x, p):
    """Pure-JAX reference mirroring the PyTorch forward."""
    def ln(v, g, b):
        mu = jnp.mean(v, axis=-1, keepdims=True)
        var = jnp.mean((v - mu) ** 2, axis=-1, keepdims=True)
        return (v - mu) / jnp.sqrt(var + 1e-6) * g + b

    def gelu(v):
        return 0.5 * v * (1.0 + jax.lax.erf(v / jnp.sqrt(2.0)))

    h = x
    y = ln(x, p["pre_g"], p["pre_b"])
    y = jnp.swapaxes(y, -1, -2)                       # (B, D, S)
    y = gelu(y @ p["tok_w0"] + p["tok_b0"]) @ p["tok_w1"] + p["tok_b1"]
    y = jnp.swapaxes(y, -1, -2) + h                   # (B, S, D)
    h = y
    z = ln(y, p["post_g"], p["post_b"])
    z = gelu(z @ p["ch_w0"] + p["ch_b0"]) @ p["ch_w1"] + p["ch_b1"]
    return z + h


if __name__ == "__main__":
    # config: n_patches=16, hidden_dim=32, tokens_mlp_dim=64, channels_mlp_dim=128.
    # batch=16: single grid step (block_b=16) on single-TC v5e/v6e; two
    # "parallel" steps (block_b=8) on megacore / dual-TC chips.
    B, S, D, T, C = 16, 16, 32, 64, 128

    key = jax.random.PRNGKey(0)
    kx, kp = jax.random.split(key)
    x = jax.random.normal(kx, (B, S, D), jnp.float32)
    params = make_params(kp, S, D, T, C)

    out = jax.block_until_ready(mixer_block(x, params))

    ref = mixer_block_ref(x, params)
    assert out.shape == (B, S, D)
    assert jnp.allclose(out, ref, atol=2e-4, rtol=2e-4), "mismatch vs reference"

    print("KERNEL_OK")
</pallas_src>

<mosaic_0001>
module attributes {stable_mosaic.version = 11 : i64} {
  func.func @mixer_block_kernel(%arg0: i32, %arg1: memref<8x16x32xf32, #tpu.memory_space<vmem>>, %arg2: memref<1x32xf32, #tpu.memory_space<vmem>>, %arg3: memref<1x32xf32, #tpu.memory_space<vmem>>, %arg4: memref<1x32xf32, #tpu.memory_space<vmem>>, %arg5: memref<1x32xf32, #tpu.memory_space<vmem>>, %arg6: memref<16x64xf32, #tpu.memory_space<vmem>>, %arg7: memref<1x64xf32, #tpu.memory_space<vmem>>, %arg8: memref<64x16xf32, #tpu.memory_space<vmem>>, %arg9: memref<1x16xf32, #tpu.memory_space<vmem>>, %arg10: memref<32x128xf32, #tpu.memory_space<vmem>>, %arg11: memref<1x128xf32, #tpu.memory_space<vmem>>, %arg12: memref<128x32xf32, #tpu.memory_space<vmem>>, %arg13: memref<1x32xf32, #tpu.memory_space<vmem>>, %arg14: memref<8x16x32xf32, #tpu.memory_space<vmem>>) attributes {dimension_semantics = [#tpu.dimension_semantics<parallel>], iteration_bounds = array<i64: 2>, scalar_prefetch = 0 : i64, scratch_operands = 0 : i64, tpu.core_type = #tpu.core_type<tc>, window_params = [{transform_indices = @transform_0, window_bounds = array<i64: 8, 16, 32>}, {pipeline_mode = #tpu.pipeline_mode<synchronous>, transform_indices = @transform_1, window_bounds = array<i64: 1, 32>}, {pipeline_mode = #tpu.pipeline_mode<synchronous>, transform_indices = @transform_2, window_bounds = array<i64: 1, 32>}, {pipeline_mode = #tpu.pipeline_mode<synchronous>, transform_indices = @transform_3, window_bounds = array<i64: 1, 32>}, {pipeline_mode = #tpu.pipeline_mode<synchronous>, transform_indices = @transform_4, window_bounds = array<i64: 1, 32>}, {pipeline_mode = #tpu.pipeline_mode<synchronous>, transform_indices = @transform_5, window_bounds = array<i64: 16, 64>}, {pipeline_mode = #tpu.pipeline_mode<synchronous>, transform_indices = @transform_6, window_bounds = array<i64: 1, 64>}, {pipeline_mode = #tpu.pipeline_mode<synchronous>, transform_indices = @transform_7, window_bounds = array<i64: 64, 16>}, {pipeline_mode = #tpu.pipeline_mode<synchronous>, transform_indices = @transform_8, window_bounds = array<i64: 1, 16>}, {pipeline_mode = #tpu.pipeline_mode<synchronous>, transform_indices = @transform_9, window_bounds = array<i64: 32, 128>}, {pipeline_mode = #tpu.pipeline_mode<synchronous>, transform_indices = @transform_10, window_bounds = array<i64: 1, 128>}, {pipeline_mode = #tpu.pipeline_mode<synchronous>, transform_indices = @transform_11, window_bounds = array<i64: 128, 32>}, {pipeline_mode = #tpu.pipeline_mode<synchronous>, transform_indices = @transform_12, window_bounds = array<i64: 1, 32>}, {transform_indices = @transform_13, window_bounds = array<i64: 8, 16, 32>}]} {
    %c0 = arith.constant 0 : index
    %c0_0 = arith.constant 0 : index
    %c0_1 = arith.constant 0 : index
    %0 = vector.load %arg1[%c0, %c0_0, %c0_1] : memref<8x16x32xf32, #tpu.memory_space<vmem>>, vector<8x16x32xf32>
    %c0_2 = arith.constant 0 : index
    %c0_3 = arith.constant 0 : index
    %1 = vector.load %arg2[%c0_2, %c0_3] : memref<1x32xf32, #tpu.memory_space<vmem>>, vector<1x32xf32>
    %c0_4 = arith.constant 0 : index
    %c0_5 = arith.constant 0 : index
    %2 = vector.load %arg3[%c0_4, %c0_5] : memref<1x32xf32, #tpu.memory_space<vmem>>, vector<1x32xf32>
    %cst = arith.constant dense<0.000000e+00> : vector<8x16xf32>
    %3 = vector.multi_reduction <add>, %0, %cst [2] : vector<8x16x32xf32> to vector<8x16xf32>
    %4 = vector.shape_cast %3 : vector<8x16xf32> to vector<8x16x1xf32>
    %cst_6 = arith.constant 3.200000e+01 : f32
    %5 = vector.broadcast %cst_6 : f32 to vector<8x16x1xf32>
    %6 = arith.divf %4, %5 : vector<8x16x1xf32>
    %7 = vector.broadcast %6 : vector<8x16x1xf32> to vector<8x16x32xf32>
    %8 = arith.subf %0, %7 : vector<8x16x32xf32>
    %9 = arith.mulf %8, %8 : vector<8x16x32xf32>
    %cst_7 = arith.constant dense<0.000000e+00> : vector<8x16xf32>
    %10 = vector.multi_reduction <add>, %9, %cst_7 [2] : vector<8x16x32xf32> to vector<8x16xf32>
    %11 = vector.shape_cast %10 : vector<8x16xf32> to vector<8x16x1xf32>
    %cst_8 = arith.constant 3.200000e+01 : f32
    %12 = vector.broadcast %cst_8 : f32 to vector<8x16x1xf32>
    %13 = arith.divf %11, %12 : vector<8x16x1xf32>
    %14 = vector.broadcast %6 : vector<8x16x1xf32> to vector<8x16x32xf32>
    %15 = arith.subf %0, %14 : vector<8x16x32xf32>
    %cst_9 = arith.constant 9.99999997E-7 : f32
    %16 = vector.broadcast %cst_9 : f32 to vector<8x16x1xf32>
    %17 = arith.addf %13, %16 : vector<8x16x1xf32>
    %18 = math.rsqrt %17 : vector<8x16x1xf32>
    %19 = vector.broadcast %18 : vector<8x16x1xf32> to vector<8x16x32xf32>
    %20 = arith.mulf %15, %19 : vector<8x16x32xf32>
    %21 = vector.shape_cast %1 : vector<1x32xf32> to vector<1x1x32xf32>
    %22 = vector.broadcast %21 : vector<1x1x32xf32> to vector<8x16x32xf32>
    %23 = arith.mulf %20, %22 : vector<8x16x32xf32>
    %24 = vector.shape_cast %2 : vector<1x32xf32> to vector<1x1x32xf32>
    %25 = vector.broadcast %24 : vector<1x1x32xf32> to vector<8x16x32xf32>
    %26 = arith.addf %23, %25 : vector<8x16x32xf32>
    %27 = tpu.transpose %26, [0, 2, 1] : vector<8x16x32xf32> -> vector<8x32x16xf32>
    %28 = vector.shape_cast %27 : vector<8x32x16xf32> to vector<256x16xf32>
    %c0_10 = arith.constant 0 : index
    %c0_11 = arith.constant 0 : index
    %29 = vector.load %arg6[%c0_10, %c0_11] : memref<16x64xf32, #tpu.memory_space<vmem>>, vector<16x64xf32>
    %cst_12 = arith.constant dense<0.000000e+00> : vector<256x64xf32>
    %30 = tpu.matmul %28, %29, %cst_12 {dimension_numbers = #tpu.dot_dimension_numbers<[1], [0], [0], [1], [0, 0, 1, 1], [], []>} : vector<256x16xf32>, vector<16x64xf32>, vector<256x64xf32> -> vector<256x64xf32>
    %c0_13 = arith.constant 0 : index
    %c0_14 = arith.constant 0 : index
    %31 = vector.load %arg7[%c0_13, %c0_14] : memref<1x64xf32, #tpu.memory_space<vmem>>, vector<1x64xf32>
    %32 = vector.broadcast %31 : vector<1x64xf32> to vector<256x64xf32>
    %33 = arith.addf %30, %32 : vector<256x64xf32>
    %cst_15 = arith.constant 5.000000e-01 : f32
    %34 = vector.broadcast %cst_15 : f32 to vector<256x64xf32>
    %35 = arith.mulf %34, %33 : vector<256x64xf32>
    %cst_16 = arith.constant 0.707106769 : f32
    %36 = vector.broadcast %cst_16 : f32 to vector<256x64xf32>
    %37 = arith.mulf %33, %36 : vector<256x64xf32>
    %38 = math.erf %37 : vector<256x64xf32>
    %cst_17 = arith.constant 1.000000e+00 : f32
    %39 = vector.broadcast %cst_17 : f32 to vector<256x64xf32>
    %40 = arith.addf %39, %38 : vector<256x64xf32>
    %41 = arith.mulf %35, %40 : vector<256x64xf32>
    %c0_18 = arith.constant 0 : index
    %c0_19 = arith.constant 0 : index
    %42 = vector.load %arg8[%c0_18, %c0_19] : memref<64x16xf32, #tpu.memory_space<vmem>>, vector<64x16xf32>
    %cst_20 = arith.constant dense<0.000000e+00> : vector<256x16xf32>
    %43 = tpu.matmul %41, %42, %cst_20 {dimension_numbers = #tpu.dot_dimension_numbers<[1], [0], [0], [1], [0, 0, 1, 1], [], []>} : vector<256x64xf32>, vector<64x16xf32>, vector<256x16xf32> -> vector<256x16xf32>
    %c0_21 = arith.constant 0 : index
    %c0_22 = arith.constant 0 : index
    %44 = vector.load %arg9[%c0_21, %c0_22] : memref<1x16xf32, #tpu.memory_space<vmem>>, vector<1x16xf32>
    %45 = vector.broadcast %44 : vector<1x16xf32> to vector<256x16xf32>
    %46 = arith.addf %43, %45 : vector<256x16xf32>
    %47 = vector.shape_cast %46 : vector<256x16xf32> to vector<8x32x16xf32>
    %48 = tpu.transpose %47, [0, 2, 1] : vector<8x32x16xf32> -> vector<8x16x32xf32>
    %49 = arith.addf %0, %48 : vector<8x16x32xf32>
    %50 = vector.shape_cast %49 : vector<8x16x32xf32> to vector<128x32xf32>
    %c0_23 = arith.constant 0 : index
    %c0_24 = arith.constant 0 : index
    %51 = vector.load %arg4[%c0_23, %c0_24] : memref<1x32xf32, #tpu.memory_space<vmem>>, vector<1x32xf32>
    %c0_25 = arith.constant 0 : index
    %c0_26 = arith.constant 0 : index
    %52 = vector.load %arg5[%c0_25, %c0_26] : memref<1x32xf32, #tpu.memory_space<vmem>>, vector<1x32xf32>
    %cst_27 = arith.constant dense<0.000000e+00> : vector<128xf32>
    %53 = vector.multi_reduction <add>, %50, %cst_27 [1] : vector<128x32xf32> to vector<128xf32>
    %54 = vector.shape_cast %53 : vector<128xf32> to vector<128x1xf32>
    %cst_28 = arith.constant 3.200000e+01 : f32
    %55 = vector.broadcast %cst_28 : f32 to vector<128x1xf32>
    %56 = arith.divf %54, %55 : vector<128x1xf32>
    %57 = vector.broadcast %56 : vector<128x1xf32> to vector<128x32xf32>
    %58 = arith.subf %50, %57 : vector<128x32xf32>
    %59 = arith.mulf %58, %58 : vector<128x32xf32>
    %cst_29 = arith.constant dense<0.000000e+00> : vector<128xf32>
    %60 = vector.multi_reduction <add>, %59, %cst_29 [1] : vector<128x32xf32> to vector<128xf32>
    %61 = vector.shape_cast %60 : vector<128xf32> to vector<128x1xf32>
    %cst_30 = arith.constant 3.200000e+01 : f32
    %62 = vector.broadcast %cst_30 : f32 to vector<128x1xf32>
    %63 = arith.divf %61, %62 : vector<128x1xf32>
    %64 = vector.broadcast %56 : vector<128x1xf32> to vector<128x32xf32>
    %65 = arith.subf %50, %64 : vector<128x32xf32>
    %cst_31 = arith.constant 9.99999997E-7 : f32
    %66 = vector.broadcast %cst_31 : f32 to vector<128x1xf32>
    %67 = arith.addf %63, %66 : vector<128x1xf32>
    %68 = math.rsqrt %67 : vector<128x1xf32>
    %69 = vector.broadcast %68 : vector<128x1xf32> to vector<128x32xf32>
    %70 = arith.mulf %65, %69 : vector<128x32xf32>
    %71 = vector.broadcast %51 : vector<1x32xf32> to vector<128x32xf32>
    %72 = arith.mulf %70, %71 : vector<128x32xf32>
    %73 = vector.broadcast %52 : vector<1x32xf32> to vector<128x32xf32>
    %74 = arith.addf %72, %73 : vector<128x32xf32>
    %c0_32 = arith.constant 0 : index
    %c0_33 = arith.constant 0 : index
    %75 = vector.load %arg10[%c0_32, %c0_33] : memref<32x128xf32, #tpu.memory_space<vmem>>, vector<32x128xf32>
    %cst_34 = arith.constant dense<0.000000e+00> : vector<128x128xf32>
    %76 = tpu.matmul %74, %75, %cst_34 {dimension_numbers = #tpu.dot_dimension_numbers<[1], [0], [0], [1], [0, 0, 1, 1], [], []>} : vector<128x32xf32>, vector<32x128xf32>, vector<128x128xf32> -> vector<128x128xf32>
    %c0_35 = arith.constant 0 : index
    %c0_36 = arith.constant 0 : index
    %77 = vector.load %arg11[%c0_35, %c0_36] : memref<1x128xf32, #tpu.memory_space<vmem>>, vector<1x128xf32>
    %78 = vector.broadcast %77 : vector<1x128xf32> to vector<128x128xf32>
    %79 = arith.addf %76, %78 : vector<128x128xf32>
    %cst_37 = arith.constant 5.000000e-01 : f32
    %80 = vector.broadcast %cst_37 : f32 to vector<128x128xf32>
    %81 = arith.mulf %80, %79 : vector<128x128xf32>
    %cst_38 = arith.constant 0.707106769 : f32
    %82 = vector.broadcast %cst_38 : f32 to vector<128x128xf32>
    %83 = arith.mulf %79, %82 : vector<128x128xf32>
    %84 = math.erf %83 : vector<128x128xf32>
    %cst_39 = arith.constant 1.000000e+00 : f32
    %85 = vector.broadcast %cst_39 : f32 to vector<128x128xf32>
    %86 = arith.addf %85, %84 : vector<128x128xf32>
    %87 = arith.mulf %81, %86 : vector<128x128xf32>
    %c0_40 = arith.constant 0 : index
    %c0_41 = arith.constant 0 : index
    %88 = vector.load %arg12[%c0_40, %c0_41] : memref<128x32xf32, #tpu.memory_space<vmem>>, vector<128x32xf32>
    %cst_42 = arith.constant dense<0.000000e+00> : vector<128x32xf32>
    %89 = tpu.matmul %87, %88, %cst_42 {dimension_numbers = #tpu.dot_dimension_numbers<[1], [0], [0], [1], [0, 0, 1, 1], [], []>} : vector<128x128xf32>, vector<128x32xf32>, vector<128x32xf32> -> vector<128x32xf32>
    %c0_43 = arith.constant 0 : index
    %c0_44 = arith.constant 0 : index
    %90 = vector.load %arg13[%c0_43, %c0_44] : memref<1x32xf32, #tpu.memory_space<vmem>>, vector<1x32xf32>
    %91 = vector.broadcast %90 : vector<1x32xf32> to vector<128x32xf32>
    %92 = arith.addf %89, %91 : vector<128x32xf32>
    %93 = arith.addf %50, %92 : vector<128x32xf32>
    %94 = vector.shape_cast %93 : vector<128x32xf32> to vector<8x16x32xf32>
    %c0_45 = arith.constant 0 : index
    %c0_46 = arith.constant 0 : index
    %c0_47 = arith.constant 0 : index
    %95 = vector.load %arg14[%c0_45, %c0_46, %c0_47] : memref<8x16x32xf32, #tpu.memory_space<vmem>>, vector<8x16x32xf32>
    tpu.vector_store %arg14[%c0_45, %c0_46, %c0_47], %94 {strides = array<i32>} : memref<8x16x32xf32, #tpu.memory_space<vmem>>, vector<8x16x32xf32>,
    return
  }
  func.func @transform_0(%arg0: i32) -> (i32, i32, i32) {
    %c0_i32 = arith.constant 0 : i32
    %c0_i32_0 = arith.constant 0 : i32
    %c0_i32_1 = arith.constant 0 : i32
    return %arg0, %c0_i32, %c0_i32_0 : i32, i32, i32
  }
  func.func @transform_1(%arg0: i32) -> (i32, i32) {
    %c0_i32 = arith.constant 0 : i32
    %c0_i32_0 = arith.constant 0 : i32
    %c0_i32_1 = arith.constant 0 : i32
    return %c0_i32, %c0_i32_0 : i32, i32
  }
  func.func @transform_2(%arg0: i32) -> (i32, i32) {
    %c0_i32 = arith.constant 0 : i32
    %c0_i32_0 = arith.constant 0 : i32
    %c0_i32_1 = arith.constant 0 : i32
    return %c0_i32, %c0_i32_0 : i32, i32
  }
  func.func @transform_3(%arg0: i32) -> (i32, i32) {
    %c0_i32 = arith.constant 0 : i32
    %c0_i32_0 = arith.constant 0 : i32
    %c0_i32_1 = arith.constant 0 : i32
    return %c0_i32, %c0_i32_0 : i32, i32
  }
  func.func @transform_4(%arg0: i32) -> (i32, i32) {
    %c0_i32 = arith.constant 0 : i32
    %c0_i32_0 = arith.constant 0 : i32
    %c0_i32_1 = arith.constant 0 : i32
    return %c0_i32, %c0_i32_0 : i32, i32
  }
  func.func @transform_5(%arg0: i32) -> (i32, i32) {
    %c0_i32 = arith.constant 0 : i32
    %c0_i32_0 = arith.constant 0 : i32
    %c0_i32_1 = arith.constant 0 : i32
    return %c0_i32, %c0_i32_0 : i32, i32
  }
  func.func @transform_6(%arg0: i32) -> (i32, i32) {
    %c0_i32 = arith.constant 0 : i32
    %c0_i32_0 = arith.constant 0 : i32
    %c0_i32_1 = arith.constant 0 : i32
    return %c0_i32, %c0_i32_0 : i32, i32
  }
  func.func @transform_7(%arg0: i32) -> (i32, i32) {
    %c0_i32 = arith.constant 0 : i32
    %c0_i32_0 = arith.constant 0 : i32
    %c0_i32_1 = arith.constant 0 : i32
    return %c0_i32, %c0_i32_0 : i32, i32
  }
  func.func @transform_8(%arg0: i32) -> (i32, i32) {
    %c0_i32 = arith.constant 0 : i32
    %c0_i32_0 = arith.constant 0 : i32
    %c0_i32_1 = arith.constant 0 : i32
    return %c0_i32, %c0_i32_0 : i32, i32
  }
  func.func @transform_9(%arg0: i32) -> (i32, i32) {
    %c0_i32 = arith.constant 0 : i32
    %c0_i32_0 = arith.constant 0 : i32
    %c0_i32_1 = arith.constant 0 : i32
    return %c0_i32, %c0_i32_0 : i32, i32
  }
  func.func @transform_10(%arg0: i32) -> (i32, i32) {
    %c0_i32 = arith.constant 0 : i32
    %c0_i32_0 = arith.constant 0 : i32
    %c0_i32_1 = arith.constant 0 : i32
    return %c0_i32, %c0_i32_0 : i32, i32
  }
  func.func @transform_11(%arg0: i32) -> (i32, i32) {
    %c0_i32 = arith.constant 0 : i32
    %c0_i32_0 = arith.constant 0 : i32
    %c0_i32_1 = arith.constant 0 : i32
    return %c0_i32, %c0_i32_0 : i32, i32
  }
  func.func @transform_12(%arg0: i32) -> (i32, i32) {
    %c0_i32 = arith.constant 0 : i32
    %c0_i32_0 = arith.constant 0 : i32
    %c0_i32_1 = arith.constant 0 : i32
    return %c0_i32, %c0_i32_0 : i32, i32
  }
  func.func @transform_13(%arg0: i32) -> (i32, i32, i32) {
    %c0_i32 = arith.constant 0 : i32
    %c0_i32_0 = arith.constant 0 : i32
    %c0_i32_1 = arith.constant 0 : i32
    return %arg0, %c0_i32, %c0_i32_0 : i32, i32, i32
  }
}

</mosaic_0001>

<llo_original>
// kernel: tpu_custom_call.1
$region0: #{tpu_custom_call.1}
  #allocation0 [shape = 'u32[]', space=smem, size = 0x4, offset = 0x4, fixed_abs, tag = 'smem constant byte address 0x4 - core index']
  #allocation1 [shape = 'u32[144,128]{1,0:T(1,128)}', space=vmem, size = 0x12000, scoped, tag = 'internal scratch']
  %s0 = inlined_call_operand.hbm [shape: f32[16,16,32], index: 0, kind: input, shape index: {}]
  %s1 = inlined_call_operand.vmem [shape: f32[1,32], index: 1, kind: input, shape index: {}]
  %s2 = inlined_call_operand.vmem [shape: f32[1,32], index: 2, kind: input, shape index: {}]
  %s3 = inlined_call_operand.vmem [shape: f32[1,32], index: 3, kind: input, shape index: {}]
  %s4 = inlined_call_operand.vmem [shape: f32[1,32], index: 4, kind: input, shape index: {}]
  %s5 = inlined_call_operand.vmem [shape: f32[16,64], index: 5, kind: input, shape index: {}]
  %s6 = inlined_call_operand.vmem [shape: f32[1,64], index: 6, kind: input, shape index: {}]
  %s7 = inlined_call_operand.vmem [shape: f32[64,16], index: 7, kind: input, shape index: {}]
  %s8 = inlined_call_operand.vmem [shape: f32[1,16], index: 8, kind: input, shape index: {}]
  %s9 = inlined_call_operand.vmem [shape: f32[32,128], index: 9, kind: input, shape index: {}]
  %s10 = inlined_call_operand.vmem [shape: f32[1,128], index: 10, kind: input, shape index: {}]
  %s11 = inlined_call_operand.vmem [shape: f32[128,32], index: 11, kind: input, shape index: {}]
  %s12 = inlined_call_operand.vmem [shape: f32[1,32], index: 12, kind: input, shape index: {}]
  %s13 = inlined_call_operand.hbm [shape: f32[16,16,32], index: 13, kind: output, shape index: {}]
  %s14 = sld [smem:[#allocation0]]
  $region89: #{tpu_custom_call.1} parent=0
    _
  %s16 = ssub.s32 1, %s14
  %s17 = scalar_select 0, %s16, %s14
  $region1: #{tpu_custom_call.1} parent=0
    #allocation2 [shape = 'u8[131072]{0}', space=vmem, size = 0x20000, scoped, tag = 'input window, operand 0']
    #allocation3 [shape = 's32[2]{0}', space=sflag, size = 0x8, scoped, tag = 'scoped memory for tpu_custom_call.1']
    #allocation4 [shape = 's32[2]{0}', space=sflag, size = 0x8, scoped, tag = 'scoped memory for tpu_custom_call.1']
    #allocation5 [shape = 'u8[131072]{0}', space=vmem, size = 0x20000, scoped, tag = 'output window, operand 0']
    %18 = vsyncpa [#allocation3], 0
    %s19 = scalar_lea.sflag [#allocation3], 1
    %20 = vsyncpa %s19, 0
    %21 = vsyncpa [#allocation4], 0
    %s22 = scalar_lea.sflag [#allocation4], 1
    %23 = vsyncpa %s22, 0
    loop: start=0, step=1, limit=4
    $region2: #{tpu_custom_call.1} parent=1 // loop_pre_header
      _
    $region3: #{tpu_custom_call.1} parent=1 // loop_header
      %s25 = sphi 0, %s29
      %p26 = scmp.ge.s32.totalorder %s25, 4
      %s35 = sphi 0, %s37
      %s38 = sphi 0, %s35
      %s39 = sphi 0, %s38
      %s55 = sphi 0, %s39
      %s59 = sphi 0, %s59
      %s61 = sphi 0, %s59
      %s62 = sphi 0, %s61
      %s76 = sphi 0, %s62
      %s80 = sphi 0, %s80
      %s82 = sphi 0, %s80
      %s83 = sphi 0, %s82
      %s97 = sphi 0, %s83
      %s101 = sphi 0, %s101
      %s103 = sphi 0, %s101
      %s104 = sphi 0, %s103
      %s118 = sphi 0, %s104
      %s122 = sphi 0, %s122
      %s124 = sphi 0, %s122
      %s125 = sphi 0, %s124
      %s139 = sphi 0, %s125
      %s143 = sphi 0, %s143
      %s145 = sphi 0, %s143
      %s146 = sphi 0, %s145
      %s160 = sphi 0, %s146
      %s164 = sphi 0, %s164
      %s166 = sphi 0, %s164
      %s167 = sphi 0, %s166
      %s181 = sphi 0, %s167
      %s185 = sphi 0, %s185
      %s187 = sphi 0, %s185
      %s188 = sphi 0, %s187
      %s202 = sphi 0, %s188
      %s206 = sphi 0, %s206
      %s208 = sphi 0, %s206
      %s209 = sphi 0, %s208
      %s223 = sphi 0, %s209
      %s227 = sphi 0, %s227
      %s229 = sphi 0, %s227
      %s230 = sphi 0, %s229
      %s244 = sphi 0, %s230
      %s248 = sphi 0, %s248
      %s250 = sphi 0, %s248
      %s251 = sphi 0, %s250
      %s265 = sphi 0, %s251
      %s269 = sphi 0, %s269
      %s271 = sphi 0, %s269
      %s272 = sphi 0, %s271
      %s286 = sphi 0, %s272
      %s290 = sphi 0, %s290
      %s292 = sphi 0, %s290
      %s293 = sphi 0, %s292
      %s307 = sphi 0, %s293
      %s313 = sphi 0, %s315
      %s316 = sphi 0, %s313
      %s317 = sphi 0, %s316
      %s333 = sphi 0, %s317
    $region4: #{tpu_custom_call.1} parent=1 // loop_header_branch
      %28 = sbr.rel (%p26) target = $region8
    $region5: #{tpu_custom_call.1} parent=1 // loop_body
      %s30 = ssub.s32 %s25, 1
      %s31 = ssub.s32 %s25, 2
      %s32 = sadd.s32 %s25, 1
      %s33 = ssub.s32 %s25, %s32
      %p34 = scmp.eq.s32.totalorder %s33, 0
      %s36 = sadd.s32 %s35, 1
      %s37 = scalar_select %p34, %s35, %s36
      %p40 = pneg %p34
      %p41 = scmp.eq.s32.totalorder %s25, 1
      %p42 = por %p40, %p41
      %p43 = scmp.ne.s32.totalorder %s35, %s38
      %p44 = scmp.eq.s32.totalorder %s25, 0
      %p45 = por %p43, %p44
      %p46 = scmp.ne.s32.totalorder %s35, %s38
      %p47 = scmp.eq.s32.totalorder %s30, 1
      %p48 = por %p46, %p47
      %p49 = scmp.ne.s32.totalorder %s38, %s39
      %p50 = scmp.eq.s32.totalorder %s30, 0
      %p51 = por %p49, %p50
      %p52 = scmp.ne.s32.totalorder %s38, %s39
      %p53 = scmp.eq.s32.totalorder %s31, 1
      %p54 = por %p52, %p53
      %p56 = scmp.ne.s32.totalorder %s39, %s55
      %p57 = scmp.eq.s32.totalorder %s31, 0
      %p58 = por %p56, %p57
      %s60 = sadd.s32 %s59, 1
      %p63 = scmp.eq.s32.totalorder %s25, 1
      %p64 = scmp.ne.s32.totalorder %s59, %s61
      %p65 = scmp.eq.s32.totalorder %s25, 0
      %p66 = por %p64, %p65
      %p67 = scmp.ne.s32.totalorder %s59, %s61
      %p68 = scmp.eq.s32.totalorder %s30, 1
      %p69 = por %p67, %p68
      %p70 = scmp.ne.s32.totalorder %s61, %s62
      %p71 = scmp.eq.s32.totalorder %s30, 0
      %p72 = por %p70, %p71
      %p73 = scmp.ne.s32.totalorder %s61, %s62
      %p74 = scmp.eq.s32.totalorder %s31, 1
      %p75 = por %p73, %p74
      %p77 = scmp.ne.s32.totalorder %s62, %s76
      %p78 = scmp.eq.s32.totalorder %s31, 0
      %p79 = por %p77, %p78
      %s81 = sadd.s32 %s80, 1
      %p84 = scmp.eq.s32.totalorder %s25, 1
      %p85 = scmp.ne.s32.totalorder %s80, %s82
      %p86 = scmp.eq.s32.totalorder %s25, 0
      %p87 = por %p85, %p86
      %p88 = scmp.ne.s32.totalorder %s80, %s82
      %p89 = scmp.eq.s32.totalorder %s30, 1
      %p90 = por %p88, %p89
      %p91 = scmp.ne.s32.totalorder %s82, %s83
      %p92 = scmp.eq.s32.totalorder %s30, 0
      %p93 = por %p91, %p92
      %p94 = scmp.ne.s32.totalorder %s82, %s83
      %p95 = scmp.eq.s32.totalorder %s31, 1
      %p96 = por %p94, %p95
      %p98 = scmp.ne.s32.totalorder %s83, %s97
      %p99 = scmp.eq.s32.totalorder %s31, 0
      %p100 = por %p98, %p99
      %s102 = sadd.s32 %s101, 1
      %p105 = scmp.eq.s32.totalorder %s25, 1
      %p106 = scmp.ne.s32.totalorder %s101, %s103
      %p107 = scmp.eq.s32.totalorder %s25, 0
      %p108 = por %p106, %p107
      %p109 = scmp.ne.s32.totalorder %s101, %s103
      %p110 = scmp.eq.s32.totalorder %s30, 1
      %p111 = por %p109, %p110
      %p112 = scmp.ne.s32.totalorder %s103, %s104
      %p113 = scmp.eq.s32.totalorder %s30, 0
      %p114 = por %p112, %p113
      %p115 = scmp.ne.s32.totalorder %s103, %s104
      %p116 = scmp.eq.s32.totalorder %s31, 1
      %p117 = por %p115, %p116
      %p119 = scmp.ne.s32.totalorder %s104, %s118
      %p120 = scmp.eq.s32.totalorder %s31, 0
      %p121 = por %p119, %p120
      %s123 = sadd.s32 %s122, 1
      %p126 = scmp.eq.s32.totalorder %s25, 1
      %p127 = scmp.ne.s32.totalorder %s122, %s124
      %p128 = scmp.eq.s32.totalorder %s25, 0
      %p129 = por %p127, %p128
      %p130 = scmp.ne.s32.totalorder %s122, %s124
      %p131 = scmp.eq.s32.totalorder %s30, 1
      %p132 = por %p130, %p131
      %p133 = scmp.ne.s32.totalorder %s124, %s125
      %p134 = scmp.eq.s32.totalorder %s30, 0
      %p135 = por %p133, %p134
      %p136 = scmp.ne.s32.totalorder %s124, %s125
      %p137 = scmp.eq.s32.totalorder %s31, 1
      %p138 = por %p136, %p137
      %p140 = scmp.ne.s32.totalorder %s125, %s139
      %p141 = scmp.eq.s32.totalorder %s31, 0
      %p142 = por %p140, %p141
      %s144 = sadd.s32 %s143, 1
      %p147 = scmp.eq.s32.totalorder %s25, 1
      %p148 = scmp.ne.s32.totalorder %s143, %s145
      %p149 = scmp.eq.s32.totalorder %s25, 0
      %p150 = por %p148, %p149
      %p151 = scmp.ne.s32.totalorder %s143, %s145
      %p152 = scmp.eq.s32.totalorder %s30, 1
      %p153 = por %p151, %p152
      %p154 = scmp.ne.s32.totalorder %s145, %s146
      %p155 = scmp.eq.s32.totalorder %s30, 0
      %p156 = por %p154, %p155
      %p157 = scmp.ne.s32.totalorder %s145, %s146
      %p158 = scmp.eq.s32.totalorder %s31, 1
      %p159 = por %p157, %p158
      %p161 = scmp.ne.s32.totalorder %s146, %s160
      %p162 = scmp.eq.s32.totalorder %s31, 0
      %p163 = por %p161, %p162
      %s165 = sadd.s32 %s164, 1
      %p168 = scmp.eq.s32.totalorder %s25, 1
      %p169 = scmp.ne.s32.totalorder %s164, %s166
      %p170 = scmp.eq.s32.totalorder %s25, 0
      %p171 = por %p169, %p170
      %p172 = scmp.ne.s32.totalorder %s164, %s166
      %p173 = scmp.eq.s32.totalorder %s30, 1
      %p174 = por %p172, %p173
      %p175 = scmp.ne.s32.totalorder %s166, %s167
      %p176 = scmp.eq.s32.totalorder %s30, 0
      %p177 = por %p175, %p176
      %p178 = scmp.ne.s32.totalorder %s166, %s167
      %p179 = scmp.eq.s32.totalorder %s31, 1
      %p180 = por %p178, %p179
      %p182 = scmp.ne.s32.totalorder %s167, %s181
      %p183 = scmp.eq.s32.totalorder %s31, 0
      %p184 = por %p182, %p183
      %s186 = sadd.s32 %s185, 1
      %p189 = scmp.eq.s32.totalorder %s25, 1
      %p190 = scmp.ne.s32.totalorder %s185, %s187
      %p191 = scmp.eq.s32.totalorder %s25, 0
      %p192 = por %p190, %p191
      %p193 = scmp.ne.s32.totalorder %s185, %s187
      %p194 = scmp.eq.s32.totalorder %s30, 1
      %p195 = por %p193, %p194
      %p196 = scmp.ne.s32.totalorder %s187, %s188
      %p197 = scmp.eq.s32.totalorder %s30, 0
      %p198 = por %p196, %p197
      %p199 = scmp.ne.s32.totalorder %s187, %s188
      %p200 = scmp.eq.s32.totalorder %s31, 1
      %p201 = por %p199, %p200
      %p203 = scmp.ne.s32.totalorder %s188, %s202
      %p204 = scmp.eq.s32.totalorder %s31, 0
      %p205 = por %p203, %p204
      %s207 = sadd.s32 %s206, 1
      %p210 = scmp.eq.s32.totalorder %s25, 1
      %p211 = scmp.ne.s32.totalorder %s206, %s208
      %p212 = scmp.eq.s32.totalorder %s25, 0
      %p213 = por %p211, %p212
      %p214 = scmp.ne.s32.totalorder %s206, %s208
      %p215 = scmp.eq.s32.totalorder %s30, 1
      %p216 = por %p214, %p215
      %p217 = scmp.ne.s32.totalorder %s208, %s209
      %p218 = scmp.eq.s32.totalorder %s30, 0
      %p219 = por %p217, %p218
      %p220 = scmp.ne.s32.totalorder %s208, %s209
      %p221 = scmp.eq.s32.totalorder %s31, 1
      %p222 = por %p220, %p221
      %p224 = scmp.ne.s32.totalorder %s209, %s223
      %p225 = scmp.eq.s32.totalorder %s31, 0
      %p226 = por %p224, %p225
      %s228 = sadd.s32 %s227, 1
      %p231 = scmp.eq.s32.totalorder %s25, 1
      %p232 = scmp.ne.s32.totalorder %s227, %s229
      %p233 = scmp.eq.s32.totalorder %s25, 0
      %p234 = por %p232, %p233
      %p235 = scmp.ne.s32.totalorder %s227, %s229
      %p236 = scmp.eq.s32.totalorder %s30, 1
      %p237 = por %p235, %p236
      %p238 = scmp.ne.s32.totalorder %s229, %s230
      %p239 = scmp.eq.s32.totalorder %s30, 0
      %p240 = por %p238, %p239
      %p241 = scmp.ne.s32.totalorder %s229, %s230
      %p242 = scmp.eq.s32.totalorder %s31, 1
      %p243 = por %p241, %p242
      %p245 = scmp.ne.s32.totalorder %s230, %s244
      %p246 = scmp.eq.s32.totalorder %s31, 0
      %p247 = por %p245, %p246
      %s249 = sadd.s32 %s248, 1
      %p252 = scmp.eq.s32.totalorder %s25, 1
      %p253 = scmp.ne.s32.totalorder %s248, %s250
      %p254 = scmp.eq.s32.totalorder %s25, 0
      %p255 = por %p253, %p254
      %p256 = scmp.ne.s32.totalorder %s248, %s250
      %p257 = scmp.eq.s32.totalorder %s30, 1
      %p258 = por %p256, %p257
      %p259 = scmp.ne.s32.totalorder %s250, %s251
      %p260 = scmp.eq.s32.totalorder %s30, 0
      %p261 = por %p259, %p260
      %p262 = scmp.ne.s32.totalorder %s250, %s251
      %p263 = scmp.eq.s32.totalorder %s31, 1
      %p264 = por %p262, %p263
      %p266 = scmp.ne.s32.totalorder %s251, %s265
      %p267 = scmp.eq.s32.totalorder %s31, 0
      %p268 = por %p266, %p267
      %s270 = sadd.s32 %s269, 1
      %p273 = scmp.eq.s32.totalorder %s25, 1
      %p274 = scmp.ne.s32.totalorder %s269, %s271
      %p275 = scmp.eq.s32.totalorder %s25, 0
      %p276 = por %p274, %p275
      %p277 = scmp.ne.s32.totalorder %s269, %s271
      %p278 = scmp.eq.s32.totalorder %s30, 1
      %p279 = por %p277, %p278
      %p280 = scmp.ne.s32.totalorder %s271, %s272
      %p281 = scmp.eq.s32.totalorder %s30, 0
      %p282 = por %p280, %p281
      %p283 = scmp.ne.s32.totalorder %s271, %s272
      %p284 = scmp.eq.s32.totalorder %s31, 1
      %p285 = por %p283, %p284
      %p287 = scmp.ne.s32.totalorder %s272, %s286
      %p288 = scmp.eq.s32.totalorder %s31, 0
      %p289 = por %p287, %p288
      %s291 = sadd.s32 %s290, 1
      %p294 = scmp.eq.s32.totalorder %s25, 1
      %p295 = scmp.ne.s32.totalorder %s290, %s292
      %p296 = scmp.eq.s32.totalorder %s25, 0
      %p297 = por %p295, %p296
      %p298 = scmp.ne.s32.totalorder %s290, %s292
      %p299 = scmp.eq.s32.totalorder %s30, 1
      %p300 = por %p298, %p299
      %p301 = scmp.ne.s32.totalorder %s292, %s293
      %p302 = scmp.eq.s32.totalorder %s30, 0
      %p303 = por %p301, %p302
      %p304 = scmp.ne.s32.totalorder %s292, %s293
      %p305 = scmp.eq.s32.totalorder %s31, 1
      %p306 = por %p304, %p305
      %p308 = scmp.ne.s32.totalorder %s293, %s307
      %p309 = scmp.eq.s32.totalorder %s31, 0
      %p310 = por %p308, %p309
      %s311 = ssub.s32 %s25, %s32
      %p312 = scmp.eq.s32.totalorder %s311, 0
      %s314 = sadd.s32 %s313, 1
      %s315 = scalar_select %p312, %s313, %s314
      %p318 = pneg %p312
      %p319 = scmp.eq.s32.totalorder %s25, 1
      %p320 = por %p318, %p319
      %p321 = scmp.ne.s32.totalorder %s313, %s316
      %p322 = scmp.eq.s32.totalorder %s25, 0
      %p323 = por %p321, %p322
      %p324 = scmp.ne.s32.totalorder %s313, %s316
      %p325 = scmp.eq.s32.totalorder %s30, 1
      %p326 = por %p324, %p325
      %p327 = scmp.ne.s32.totalorder %s316, %s317
      %p328 = scmp.eq.s32.totalorder %s30, 0
      %p329 = por %p327, %p328
      %p330 = scmp.ne.s32.totalorder %s316, %s317
      %p331 = scmp.eq.s32.totalorder %s31, 1
      %p332 = por %p330, %p331
      %p334 = scmp.ne.s32.totalorder %s317, %s333
      %p335 = scmp.eq.s32.totalorder %s31, 0
      %p336 = por %p334, %p335
      %p337 = scmp.le.s32.totalorder 1, %s25
      %p338 = scmp.lt.s32.totalorder %s25, 3
      %p339 = pnand %p337, %p338
      %p340 = pneg %p339
      // Predicated region
      $region9: #{tpu_custom_call.1} parent=5 // pred_check
        _
      $region10: #{tpu_custom_call.1} parent=5 // pred_check_branch
        %342 = sbr.rel (%p339) target = $region12
      $region11: #{tpu_custom_call.1} parent=5 // pred_region
        %s343 = ssub.s32 %s25, 1
        // Predicated region
        $region13: #{tpu_custom_call.1} parent=11 // pred_check
          %p344 = pneg %p72
        $region14: #{tpu_custom_call.1} parent=11 // pred_check_branch
          %346 = sbr.rel (%p344) target = $region16
        $region15: #{tpu_custom_call.1} parent=11 // pred_region
          _
        $region16: #{tpu_custom_call.1} parent=11 // pred_fallthru
          _
        // Predicated region
        $region17: #{tpu_custom_call.1} parent=11 // pred_check
          %p347 = pneg %p93
        $region18: #{tpu_custom_call.1} parent=11 // pred_check_branch
          %349 = sbr.rel (%p347) target = $region20
        $region19: #{tpu_custom_call.1} parent=11 // pred_region
          _
        $region20: #{tpu_custom_call.1} parent=11 // pred_fallthru
          _
        // Predicated region
        $region21: #{tpu_custom_call.1} parent=11 // pred_check
          %p350 = pneg %p114
        $region22: #{tpu_custom_call.1} parent=11 // pred_check_branch
          %352 = sbr.rel (%p350) target = $region24
        $region23: #{tpu_custom_call.1} parent=11 // pred_region
          _
        $region24: #{tpu_custom_call.1} parent=11 // pred_fallthru
          _
        // Predicated region
        $region25: #{tpu_custom_call.1} parent=11 // pred_check
          %p353 = pneg %p135
        $region26: #{tpu_custom_call.1} parent=11 // pred_check_branch
          %355 = sbr.rel (%p353) target = $region28
        $region27: #{tpu_custom_call.1} parent=11 // pred_region
          _
        $region28: #{tpu_custom_call.1} parent=11 // pred_fallthru
          _
        // Predicated region
        $region29: #{tpu_custom_call.1} parent=11 // pred_check
          %p356 = pneg %p156
        $region30: #{tpu_custom_call.1} parent=11 // pred_check_branch
          %358 = sbr.rel (%p356) target = $region32
        $region31: #{tpu_custom_call.1} parent=11 // pred_region
          _
        $region32: #{tpu_custom_call.1} parent=11 // pred_fallthru
          _
        // Predicated region
        $region33: #{tpu_custom_call.1} parent=11 // pred_check
          %p359 = pneg %p177
        $region34: #{tpu_custom_call.1} parent=11 // pred_check_branch
          %361 = sbr.rel (%p359) target = $region36
        $region35: #{tpu_custom_call.1} parent=11 // pred_region
          _
        $region36: #{tpu_custom_call.1} parent=11 // pred_fallthru
          _
        // Predicated region
        $region37: #{tpu_custom_call.1} parent=11 // pred_check
          %p362 = pneg %p198
        $region38: #{tpu_custom_call.1} parent=11 // pred_check_branch
          %364 = sbr.rel (%p362) target = $region40
        $region39: #{tpu_custom_call.1} parent=11 // pred_region
          _
        $region40: #{tpu_custom_call.1} parent=11 // pred_fallthru
          _
        // Predicated region
        $region41: #{tpu_custom_call.1} parent=11 // pred_check
          %p365 = pneg %p219
        $region42: #{tpu_custom_call.1} parent=11 // pred_check_branch
          %367 = sbr.rel (%p365) target = $region44
        $region43: #{tpu_custom_call.1} parent=11 // pred_region
          _
        $region44: #{tpu_custom_call.1} parent=11 // pred_fallthru
          _
        // Predicated region
        $region45: #{tpu_custom_call.1} parent=11 // pred_check
          %p368 = pneg %p240
        $region46: #{tpu_custom_call.1} parent=11 // pred_check_branch
          %370 = sbr.rel (%p368) target = $region48
        $region47: #{tpu_custom_call.1} parent=11 // pred_region
          _
        $region48: #{tpu_custom_call.1} parent=11 // pred_fallthru
          _
        // Predicated region
        $region49: #{tpu_custom_call.1} parent=11 // pred_check
          %p371 = pneg %p261
        $region50: #{tpu_custom_call.1} parent=11 // pred_check_branch
          %373 = sbr.rel (%p371) target = $region52
        $region51: #{tpu_custom_call.1} parent=11 // pred_region
          _
        $region52: #{tpu_custom_call.1} parent=11 // pred_fallthru
          _
        // Predicated region
        $region53: #{tpu_custom_call.1} parent=11 // pred_check
          %p374 = pneg %p282
        $region54: #{tpu_custom_call.1} parent=11 // pred_check_branch
          %376 = sbr.rel (%p374) target = $region56
        $region55: #{tpu_custom_call.1} parent=11 // pred_region
          _
        $region56: #{tpu_custom_call.1} parent=11 // pred_fallthru
          _
        // Predicated region
        $region57: #{tpu_custom_call.1} parent=11 // pred_check
          %p377 = pneg %p303
        $region58: #{tpu_custom_call.1} parent=11 // pred_check_branch
          %379 = sbr.rel (%p377) target = $region60
        $region59: #{tpu_custom_call.1} parent=11 // pred_region
          _
        $region60: #{tpu_custom_call.1} parent=11 // pred_fallthru
          _
      $region12: #{tpu_custom_call.1} parent=5 // pred_fallthru
        _
      %p380 = scmp.lt.s32.totalorder %s25, 2
      // Predicated region
      $region61: #{tpu_custom_call.1} parent=5 // pred_check
        %p381 = pneg %p380
      $region62: #{tpu_custom_call.1} parent=5 // pred_check_branch
        %383 = sbr.rel (%p381) target = $region64
      $region63: #{tpu_custom_call.1} parent=5 // pred_region
        // Predicated region
        $region65: #{tpu_custom_call.1} parent=63 // pred_check
          %p384 = pneg %p45
        $region66: #{tpu_custom_call.1} parent=63 // pred_check_branch
          %386 = sbr.rel (%p384) target = $region68
        $region67: #{tpu_custom_call.1} parent=63 // pred_region
          %s387 = sand.u32 %s35, 1
          %s388 = scalar_lea.sflag [#allocation3], %s387
          %s389 = sand.u32 %s35, 1
          %s390 = smul.addr %s389, 128
          %s391 = scalar_lea.vmem [#allocation2], %s390
          %s392 = smul.u32 8, %s25
          %s394 = ssub.s32 2048, 2048
          %395 = vsyncadd %s388, %s394
          %s396 = smul.addr %s392, 2
          %s397 = smul.addr %s396, 128
          %s398 = scalar_lea.hbm %s0, %s397
          %s399 = sshll.u32 %s391, 4
          %s400 = int_to_ptr.vmem [resolvable:$true] %s399
          %405 = dma.hbm_to_vmem [thread:$0]  %s398, 2048, %s400, %s388, 128, 128, 8
        $region68: #{tpu_custom_call.1} parent=63 // pred_fallthru
          _
      $region64: #{tpu_custom_call.1} parent=5 // pred_fallthru
        _
      %p406 = scmp.le.s32.totalorder 1, %s25
      %p407 = scmp.lt.s32.totalorder %s25, 3
      %p408 = pnand %p406, %p407
      %p409 = pneg %p408
      // Predicated region
      $region69: #{tpu_custom_call.1} parent=5 // pred_check
        _
      $region70: #{tpu_custom_call.1} parent=5 // pred_check_branch
        %411 = sbr.rel (%p408) target = $region72
      $region71: #{tpu_custom_call.1} parent=5 // pred_region
        %s412 = ssub.s32 %s25, 1
        %s413 = sand.u32 %s38, 1
        %s414 = scalar_lea.sflag [#allocation3], %s413
        %s415 = sand.u32 %s38, 1
        %s416 = smul.addr %s415, 128
        %s417 = scalar_lea.vmem [#allocation2], %s416
        // Predicated region
        $region73: #{tpu_custom_call.1} parent=71 // pred_check
          %p418 = pneg %p51
        $region74: #{tpu_custom_call.1} parent=71 // pred_check_branch
          %420 = sbr.rel (%p418) target = $region76
        $region75: #{tpu_custom_call.1} parent=71 // pred_region
          %421 = dma.done %s414, 2048
        $region76: #{tpu_custom_call.1} parent=71 // pred_fallthru
          _
        %s422 = sand.u32 %s38, 1
        %s423 = scalar_lea.sflag [#allocation3], %s422
        %s424 = sand.u32 %s38, 1
        %s425 = smul.addr %s424, 128
        %s426 = scalar_lea.vmem [#allocation2], %s425
        %p427 = pneg %p51
        %p428 = pneg %p48
        %p429 = pneg %p72
        %p430 = pneg %p69
        %p431 = pneg %p93
        %p432 = pneg %p90
        %p433 = pneg %p114
        %p434 = pneg %p111
        %p435 = pneg %p135
        %p436 = pneg %p132
        %p437 = pneg %p156
        %p438 = pneg %p153
        %p439 = pneg %p177
        %p440 = pneg %p174
        %p441 = pneg %p198
        %p442 = pneg %p195
        %p443 = pneg %p219
        %p444 = pneg %p216
        %p445 = pneg %p240
        %p446 = pneg %p237
        %p447 = pneg %p261
        %p448 = pneg %p258
        %p449 = pneg %p282
        %p450 = pneg %p279
        %p451 = pneg %p303
        %p452 = pneg %p300
        %p453 = pneg %p329
        %p454 = pneg %p326
        %s455 = sand.u32 %s316, 1
        %s456 = scalar_lea.sflag [#allocation4], %s455
        %s457 = sand.u32 %s316, 1
        %s458 = smul.addr %s457, 128
        %s459 = scalar_lea.vmem [#allocation5], %s458
        %s460 = smul.u32 8, %s30
        %s461 = smul.u32 8, %s30
        %v462 = vld [vmem:[%s417] sm:$0xff]
        %v463 = vld [vmem:[%s417 + $0x8] sm:$0xff]
        %v464 = vld [vmem:[%s417 + $0x10] sm:$0xff]
        %v465 = vld [vmem:[%s417 + $0x18] sm:$0xff]
        %v466 = vld [vmem:[%s417 + $0x20] sm:$0xff]
        %v467 = vld [vmem:[%s417 + $0x28] sm:$0xff]
        %v468 = vld [vmem:[%s417 + $0x30] sm:$0xff]
        %v469 = vld [vmem:[%s417 + $0x38] sm:$0xff]
        %v470 = vld [vmem:[%s417 + $0x40] sm:$0xff]
        %v471 = vld [vmem:[%s417 + $0x48] sm:$0xff]
        %v472 = vld [vmem:[%s417 + $0x50] sm:$0xff]
        %v473 = vld [vmem:[%s417 + $0x58] sm:$0xff]
        %v474 = vld [vmem:[%s417 + $0x60] sm:$0xff]
        %v475 = vld [vmem:[%s417 + $0x68] sm:$0xff]
        %v476 = vld [vmem:[%s417 + $0x70] sm:$0xff]
        %v477 = vld [vmem:[%s417 + $0x78] sm:$0xff]
        %v478 = vld [vmem:[%s1] sm:$0x1]
        %v479 = vld [vmem:[%s2] sm:$0x1]
        %vm480 = vcmask 261120
        %v481 = vsel %vm480, %v462, 0.0
        %482 = vadd.xlane.f32.xlu0 %v481
        %v483 = vpop.xlane.xlu0 %482
        %v484 = vsel %vm480, %v463, 0.0
        %485 = vadd.xlane.f32.xlu0 %v484
        %v486 = vpop.xlane.xlu0 %485
        %v487 = vsel %vm480, %v464, 0.0
        %488 = vadd.xlane.f32.xlu0 %v487
        %v489 = vpop.xlane.xlu0 %488
        %v490 = vsel %vm480, %v465, 0.0
        %491 = vadd.xlane.f32.xlu0 %v490
        %v492 = vpop.xlane.xlu0 %491
        %v493 = vsel %vm480, %v466, 0.0
        %494 = vadd.xlane.f32.xlu0 %v493
        %v495 = vpop.xlane.xlu0 %494
        %v496 = vsel %vm480, %v467, 0.0
        %497 = vadd.xlane.f32.xlu0 %v496
        %v498 = vpop.xlane.xlu0 %497
        %v499 = vsel %vm480, %v468, 0.0
        %500 = vadd.xlane.f32.xlu0 %v499
        %v501 = vpop.xlane.xlu0 %500
        %v502 = vsel %vm480, %v469, 0.0
        %503 = vadd.xlane.f32.xlu0 %v502
        %v504 = vpop.xlane.xlu0 %503
        %v505 = vsel %vm480, %v470, 0.0
        %506 = vadd.xlane.f32.xlu0 %v505
        %v507 = vpop.xlane.xlu0 %506
        %v508 = vsel %vm480, %v471, 0.0
        %509 = vadd.xlane.f32.xlu0 %v508
        %v510 = vpop.xlane.xlu0 %509
        %v511 = vsel %vm480, %v472, 0.0
        %512 = vadd.xlane.f32.xlu0 %v511
        %v513 = vpop.xlane.xlu0 %512
        %v514 = vsel %vm480, %v473, 0.0
        %515 = vadd.xlane.f32.xlu0 %v514
        %v516 = vpop.xlane.xlu0 %515
        %v517 = vsel %vm480, %v474, 0.0
        %518 = vadd.xlane.f32.xlu0 %v517
        %v519 = vpop.xlane.xlu0 %518
        %v520 = vsel %vm480, %v475, 0.0
        %521 = vadd.xlane.f32.xlu0 %v520
        %v522 = vpop.xlane.xlu0 %521
        %v523 = vsel %vm480, %v476, 0.0
        %524 = vadd.xlane.f32.xlu0 %v523
        %v525 = vpop.xlane.xlu0 %524
        %v526 = vsel %vm480, %v477, 0.0
        %527 = vadd.xlane.f32.xlu0 %v526
        %v528 = vpop.xlane.xlu0 %527
        %v529 = vrcp.pop 32.0
        %v530 = vmul.f32 %v483, %v529
        %v531 = vmul.f32 %v486, %v529
        %v532 = vmul.f32 %v489, %v529
        %v533 = vmul.f32 %v492, %v529
        %v534 = vmul.f32 %v495, %v529
        %v535 = vmul.f32 %v498, %v529
        %v536 = vmul.f32 %v501, %v529
        %v537 = vmul.f32 %v504, %v529
        %v538 = vmul.f32 %v507, %v529
        %v539 = vmul.f32 %v510, %v529
        %v540 = vmul.f32 %v513, %v529
        %v541 = vmul.f32 %v516, %v529
        %v542 = vmul.f32 %v519, %v529
        %v543 = vmul.f32 %v522, %v529
        %v544 = vmul.f32 %v525, %v529
        %v545 = vmul.f32 %v528, %v529
        %v546 = vsub.f32 %v462, %v530
        %v547 = vsub.f32 %v463, %v531
        %v548 = vsub.f32 %v464, %v532
        %v549 = vsub.f32 %v465, %v533
        %v550 = vsub.f32 %v466, %v534
        %v551 = vsub.f32 %v467, %v535
        %v552 = vsub.f32 %v468, %v536
        %v553 = vsub.f32 %v469, %v537
        %v554 = vsub.f32 %v470, %v538
        %v555 = vsub.f32 %v471, %v539
        %v556 = vsub.f32 %v472, %v540
        %v557 = vsub.f32 %v473, %v541
        %v558 = vsub.f32 %v474, %v542
        %v559 = vsub.f32 %v475, %v543
        %v560 = vsub.f32 %v476, %v544
        %v561 = vsub.f32 %v477, %v545
        %v562 = vmul.f32 %v546, %v546
        %v563 = vmul.f32 %v547, %v547
        %v564 = vmul.f32 %v548, %v548
        %v565 = vmul.f32 %v549, %v549
        %v566 = vmul.f32 %v550, %v550
        %v567 = vmul.f32 %v551, %v551
        %v568 = vmul.f32 %v552, %v552
        %v569 = vmul.f32 %v553, %v553
        %v570 = vmul.f32 %v554, %v554
        %v571 = vmul.f32 %v555, %v555
        %v572 = vmul.f32 %v556, %v556
        %v573 = vmul.f32 %v557, %v557
        %v574 = vmul.f32 %v558, %v558
        %v575 = vmul.f32 %v559, %v559
        %v576 = vmul.f32 %v560, %v560
        %v577 = vmul.f32 %v561, %v561
        %v578 = vsel %vm480, %v562, 0.0
        %579 = vadd.xlane.f32.xlu0 %v578
        %v580 = vpop.xlane.xlu0 %579
        %v581 = vsel %vm480, %v563, 0.0
        %582 = vadd.xlane.f32.xlu0 %v581
        %v583 = vpop.xlane.xlu0 %582
        %v584 = vsel %vm480, %v564, 0.0
        %585 = vadd.xlane.f32.xlu0 %v584
        %v586 = vpop.xlane.xlu0 %585
        %v587 = vsel %vm480, %v565, 0.0
        %588 = vadd.xlane.f32.xlu0 %v587
        %v589 = vpop.xlane.xlu0 %588
        %v590 = vsel %vm480, %v566, 0.0
        %591 = vadd.xlane.f32.xlu0 %v590
        %v592 = vpop.xlane.xlu0 %591
        %v593 = vsel %vm480, %v567, 0.0
        %594 = vadd.xlane.f32.xlu0 %v593
        %v595 = vpop.xlane.xlu0 %594
        %v596 = vsel %vm480, %v568, 0.0
        %597 = vadd.xlane.f32.xlu0 %v596
        %v598 = vpop.xlane.xlu0 %597
        %v599 = vsel %vm480, %v569, 0.0
        %600 = vadd.xlane.f32.xlu0 %v599
        %v601 = vpop.xlane.xlu0 %600
        %v602 = vsel %vm480, %v570, 0.0
        %603 = vadd.xlane.f32.xlu0 %v602
        %v604 = vpop.xlane.xlu0 %603
        %v605 = vsel %vm480, %v571, 0.0
        %606 = vadd.xlane.f32.xlu0 %v605
        %v607 = vpop.xlane.xlu0 %606
        %v608 = vsel %vm480, %v572, 0.0
        %609 = vadd.xlane.f32.xlu0 %v608
        %v610 = vpop.xlane.xlu0 %609
        %v611 = vsel %vm480, %v573, 0.0
        %612 = vadd.xlane.f32.xlu0 %v611
        %v613 = vpop.xlane.xlu0 %612
        %v614 = vsel %vm480, %v574, 0.0
        %615 = vadd.xlane.f32.xlu0 %v614
        %v616 = vpop.xlane.xlu0 %615
        %v617 = vsel %vm480, %v575, 0.0
        %618 = vadd.xlane.f32.xlu0 %v617
        %v619 = vpop.xlane.xlu0 %618
        %v620 = vsel %vm480, %v576, 0.0
        %621 = vadd.xlane.f32.xlu0 %v620
        %v622 = vpop.xlane.xlu0 %621
        %v623 = vsel %vm480, %v577, 0.0
        %624 = vadd.xlane.f32.xlu0 %v623
        %v625 = vpop.xlane.xlu0 %624
        %v626 = vmul.f32 %v580, %v529
        %v627 = vmul.f32 %v583, %v529
        %v628 = vmul.f32 %v586, %v529
        %v629 = vmul.f32 %v589, %v529
        %v630 = vmul.f32 %v592, %v529
        %v631 = vmul.f32 %v595, %v529
        %v632 = vmul.f32 %v598, %v529
        %v633 = vmul.f32 %v601, %v529
        %v634 = vmul.f32 %v604, %v529
        %v635 = vmul.f32 %v607, %v529
        %v636 = vmul.f32 %v610, %v529
        %v637 = vmul.f32 %v613, %v529
        %v638 = vmul.f32 %v616, %v529
        %v639 = vmul.f32 %v619, %v529
        %v640 = vmul.f32 %v622, %v529
        %v641 = vmul.f32 %v625, %v529
        %v642 = vadd.f32 %v626, 1e-06
        %v643 = vadd.f32 %v627, 1e-06
        %v644 = vadd.f32 %v628, 1e-06
        %v645 = vadd.f32 %v629, 1e-06
        %v646 = vadd.f32 %v630, 1e-06
        %v647 = vadd.f32 %v631, 1e-06
        %v648 = vadd.f32 %v632, 1e-06
        %v649 = vadd.f32 %v633, 1e-06
        %v650 = vadd.f32 %v634, 1e-06
        %v651 = vadd.f32 %v635, 1e-06
        %v652 = vadd.f32 %v636, 1e-06
        %v653 = vadd.f32 %v637, 1e-06
        %v654 = vadd.f32 %v638, 1e-06
        %v655 = vadd.f32 %v639, 1e-06
        %v656 = vadd.f32 %v640, 1e-06
        %v657 = vadd.f32 %v641, 1e-06
        %v658 = vrsqrt.pop %v642
        %v659 = vrsqrt.pop %v643
        %v660 = vrsqrt.pop %v644
        %v661 = vrsqrt.pop %v645
        %v662 = vrsqrt.pop %v646
        %v663 = vrsqrt.pop %v647
        %v664 = vrsqrt.pop %v648
        %v665 = vrsqrt.pop %v649
        %v666 = vrsqrt.pop %v650
        %v667 = vrsqrt.pop %v651
        %v668 = vrsqrt.pop %v652
        %v669 = vrsqrt.pop %v653
        %v670 = vrsqrt.pop %v654
        %v671 = vrsqrt.pop %v655
        %v672 = vrsqrt.pop %v656
        %v673 = vrsqrt.pop %v657
        %v674 = vmul.f32 %v546, %v658
        %v675 = vmul.f32 %v547, %v659
        %v676 = vmul.f32 %v548, %v660
        %v677 = vmul.f32 %v549, %v661
        %v678 = vmul.f32 %v550, %v662
        %v679 = vmul.f32 %v551, %v663
        %v680 = vmul.f32 %v552, %v664
        %v681 = vmul.f32 %v553, %v665
        %v682 = vmul.f32 %v554, %v666
        %v683 = vmul.f32 %v555, %v667
        %v684 = vmul.f32 %v556, %v668
        %v685 = vmul.f32 %v557, %v669
        %v686 = vmul.f32 %v558, %v670
        %v687 = vmul.f32 %v559, %v671
        %v688 = vmul.f32 %v560, %v672
        %v689 = vmul.f32 %v561, %v673
        %v691 = vlaneseq
        %v692 = vshrl.u32 %v691, 7
        %v693 = vsub.s32 0, %v692
        %v694 = vrot.slane %v478, %v693
        %v696 = vmul.f32 %v674, %v694
        %v697 = vmul.f32 %v675, %v694
        %v698 = vmul.f32 %v676, %v694
        %v699 = vmul.f32 %v677, %v694
        %v700 = vmul.f32 %v678, %v694
        %v701 = vmul.f32 %v679, %v694
        %v702 = vmul.f32 %v680, %v694
        %v703 = vmul.f32 %v681, %v694
        %v704 = vmul.f32 %v682, %v694
        %v705 = vmul.f32 %v683, %v694
        %v706 = vmul.f32 %v684, %v694
        %v707 = vmul.f32 %v685, %v694
        %v708 = vmul.f32 %v686, %v694
        %v709 = vmul.f32 %v687, %v694
        %v710 = vmul.f32 %v688, %v694
        %v711 = vmul.f32 %v689, %v694
        %v713 = vlaneseq
        %v714 = vshrl.u32 %v713, 7
        %v715 = vsub.s32 0, %v714
        %v716 = vrot.slane %v479, %v715
        %v718 = vadd.f32 %v696, %v716
        %v719 = vadd.f32 %v697, %v716
        %v720 = vadd.f32 %v698, %v716
        %v721 = vadd.f32 %v699, %v716
        %v722 = vadd.f32 %v700, %v716
        %v723 = vadd.f32 %v701, %v716
        %v724 = vadd.f32 %v702, %v716
        %v725 = vadd.f32 %v703, %v716
        %v726 = vadd.f32 %v704, %v716
        %v727 = vadd.f32 %v705, %v716
        %v728 = vadd.f32 %v706, %v716
        %v729 = vadd.f32 %v707, %v716
        %v730 = vadd.f32 %v708, %v716
        %v731 = vadd.f32 %v709, %v716
        %v732 = vadd.f32 %v710, %v716
        %v733 = vadd.f32 %v711, %v716
        %734 = vxpose.xlu0.b32.start [1/16] %v718, 128
        %735 = vxpose.xlu0.b32.cont [2/16] %v719, 128
        %736 = vxpose.xlu0.b32.cont [3/16] 0.0, 128
        %737 = vxpose.xlu0.b32.cont [4/16] 0.0, 128
        %738 = vxpose.xlu0.b32.cont [5/16] 0.0, 128
        %739 = vxpose.xlu0.b32.cont [6/16] 0.0, 128
        %740 = vxpose.xlu0.b32.cont [7/16] 0.0, 128
        %741 = vxpose.xlu0.b32.cont [8/16] 0.0, 128
        %742 = vxpose.xlu0.b32.cont [9/16] 0.0, 128
        %743 = vxpose.xlu0.b32.cont [10/16] 0.0, 128
        %744 = vxpose.xlu0.b32.cont [11/16] 0.0, 128
        %745 = vxpose.xlu0.b32.cont [12/16] 0.0, 128
        %746 = vxpose.xlu0.b32.cont [13/16] 0.0, 128
        %747 = vxpose.xlu0.b32.cont [14/16] 0.0, 128
        %748 = vxpose.xlu0.b32.cont [15/16] 0.0, 128
        %749 = vxpose.xlu0.b32.end [16/16] 0.0, 128
        %v750 = vpop.trf.xlu0
        %v751 = vpop.trf.xlu0
        %v752 = vpop.trf.xlu0
        %v753 = vpop.trf.xlu0
        %v754 = vpop.trf.xlu0
        %v755 = vpop.trf.xlu0
        %v756 = vpop.trf.xlu0
        %v757 = vpop.trf.xlu0
        %v758 = vpop.trf.xlu0
        %v759 = vpop.trf.xlu0
        %v760 = vpop.trf.xlu0
        %v761 = vpop.trf.xlu0
        %v762 = vpop.trf.xlu0
        %v763 = vpop.trf.xlu0
        %v764 = vpop.trf.xlu0
        %v765 = vpop.trf.xlu0
        %766 = vxpose.xlu0.b32.start [1/16] %v720, 128
        %767 = vxpose.xlu0.b32.cont [2/16] %v721, 128
        %768 = vxpose.xlu0.b32.cont [3/16] 0.0, 128
        %769 = vxpose.xlu0.b32.cont [4/16] 0.0, 128
        %770 = vxpose.xlu0.b32.cont [5/16] 0.0, 128
        %771 = vxpose.xlu0.b32.cont [6/16] 0.0, 128
        %772 = vxpose.xlu0.b32.cont [7/16] 0.0, 128
        %773 = vxpose.xlu0.b32.cont [8/16] 0.0, 128
        %774 = vxpose.xlu0.b32.cont [9/16] 0.0, 128
        %775 = vxpose.xlu0.b32.cont [10/16] 0.0, 128
        %776 = vxpose.xlu0.b32.cont [11/16] 0.0, 128
        %777 = vxpose.xlu0.b32.cont [12/16] 0.0, 128
        %778 = vxpose.xlu0.b32.cont [13/16] 0.0, 128
        %779 = vxpose.xlu0.b32.cont [14/16] 0.0, 128
        %780 = vxpose.xlu0.b32.cont [15/16] 0.0, 128
        %781 = vxpose.xlu0.b32.end [16/16] 0.0, 128
        %v782 = vpop.trf.xlu0
        %v783 = vpop.trf.xlu0
        %v784 = vpop.trf.xlu0
        %v785 = vpop.trf.xlu0
        %v786 = vpop.trf.xlu0
        %v787 = vpop.trf.xlu0
        %v788 = vpop.trf.xlu0
        %v789 = vpop.trf.xlu0
        %v790 = vpop.trf.xlu0
        %v791 = vpop.trf.xlu0
        %v792 = vpop.trf.xlu0
        %v793 = vpop.trf.xlu0
        %v794 = vpop.trf.xlu0
        %v795 = vpop.trf.xlu0
        %v796 = vpop.trf.xlu0
        %v797 = vpop.trf.xlu0
        %798 = vxpose.xlu0.b32.start [1/16] %v722, 128
        %799 = vxpose.xlu0.b32.cont [2/16] %v723, 128
        %800 = vxpose.xlu0.b32.cont [3/16] 0.0, 128
        %801 = vxpose.xlu0.b32.cont [4/16] 0.0, 128
        %802 = vxpose.xlu0.b32.cont [5/16] 0.0, 128
        %803 = vxpose.xlu0.b32.cont [6/16] 0.0, 128
        %804 = vxpose.xlu0.b32.cont [7/16] 0.0, 128
        %805 = vxpose.xlu0.b32.cont [8/16] 0.0, 128
        %806 = vxpose.xlu0.b32.cont [9/16] 0.0, 128
        %807 = vxpose.xlu0.b32.cont [10/16] 0.0, 128
        %808 = vxpose.xlu0.b32.cont [11/16] 0.0, 128
        %809 = vxpose.xlu0.b32.cont [12/16] 0.0, 128
        %810 = vxpose.xlu0.b32.cont [13/16] 0.0, 128
        %811 = vxpose.xlu0.b32.cont [14/16] 0.0, 128
        %812 = vxpose.xlu0.b32.cont [15/16] 0.0, 128
        %813 = vxpose.xlu0.b32.end [16/16] 0.0, 128
        %v814 = vpop.trf.xlu0
        %v815 = vpop.trf.xlu0
        %v816 = vpop.trf.xlu0
        %v817 = vpop.trf.xlu0
        %v818 = vpop.trf.xlu0
        %v819 = vpop.trf.xlu0
        %v820 = vpop.trf.xlu0
        %v821 = vpop.trf.xlu0
        %v822 = vpop.trf.xlu0
        %v823 = vpop.trf.xlu0
        %v824 = vpop.trf.xlu0
        %v825 = vpop.trf.xlu0
        %v826 = vpop.trf.xlu0
        %v827 = vpop.trf.xlu0
        %v828 = vpop.trf.xlu0
        %v829 = vpop.trf.xlu0
        %830 = vxpose.xlu0.b32.start [1/16] %v724, 128
        %831 = vxpose.xlu0.b32.cont [2/16] %v725, 128
        %832 = vxpose.xlu0.b32.cont [3/16] 0.0, 128
        %833 = vxpose.xlu0.b32.cont [4/16] 0.0, 128
        %834 = vxpose.xlu0.b32.cont [5/16] 0.0, 128
        %835 = vxpose.xlu0.b32.cont [6/16] 0.0, 128
        %836 = vxpose.xlu0.b32.cont [7/16] 0.0, 128
        %837 = vxpose.xlu0.b32.cont [8/16] 0.0, 128
        %838 = vxpose.xlu0.b32.cont [9/16] 0.0, 128
        %839 = vxpose.xlu0.b32.cont [10/16] 0.0, 128
        %840 = vxpose.xlu0.b32.cont [11/16] 0.0, 128
        %841 = vxpose.xlu0.b32.cont [12/16] 0.0, 128
        %842 = vxpose.xlu0.b32.cont [13/16] 0.0, 128
        %843 = vxpose.xlu0.b32.cont [14/16] 0.0, 128
        %844 = vxpose.xlu0.b32.cont [15/16] 0.0, 128
        %845 = vxpose.xlu0.b32.end [16/16] 0.0, 128
        %v846 = vpop.trf.xlu0
        %v847 = vpop.trf.xlu0
        %v848 = vpop.trf.xlu0
        %v849 = vpop.trf.xlu0
        %v850 = vpop.trf.xlu0
        %v851 = vpop.trf.xlu0
        %v852 = vpop.trf.xlu0
        %v853 = vpop.trf.xlu0
        %v854 = vpop.trf.xlu0
        %v855 = vpop.trf.xlu0
        %v856 = vpop.trf.xlu0
        %v857 = vpop.trf.xlu0
        %v858 = vpop.trf.xlu0
        %v859 = vpop.trf.xlu0
        %v860 = vpop.trf.xlu0
        %v861 = vpop.trf.xlu0
        %862 = vxpose.xlu0.b32.start [1/16] %v726, 128
        %863 = vxpose.xlu0.b32.cont [2/16] %v727, 128
        %864 = vxpose.xlu0.b32.cont [3/16] 0.0, 128
        %865 = vxpose.xlu0.b32.cont [4/16] 0.0, 128
        %866 = vxpose.xlu0.b32.cont [5/16] 0.0, 128
        %867 = vxpose.xlu0.b32.cont [6/16] 0.0, 128
        %868 = vxpose.xlu0.b32.cont [7/16] 0.0, 128
        %869 = vxpose.xlu0.b32.cont [8/16] 0.0, 128
        %870 = vxpose.xlu0.b32.cont [9/16] 0.0, 128
        %871 = vxpose.xlu0.b32.cont [10/16] 0.0, 128
        %872 = vxpose.xlu0.b32.cont [11/16] 0.0, 128
        %873 = vxpose.xlu0.b32.cont [12/16] 0.0, 128
        %874 = vxpose.xlu0.b32.cont [13/16] 0.0, 128
        %875 = vxpose.xlu0.b32.cont [14/16] 0.0, 128
        %876 = vxpose.xlu0.b32.cont [15/16] 0.0, 128
        %877 = vxpose.xlu0.b32.end [16/16] 0.0, 128
        %v878 = vpop.trf.xlu0
        %v879 = vpop.trf.xlu0
        %v880 = vpop.trf.xlu0
        %v881 = vpop.trf.xlu0
        %v882 = vpop.trf.xlu0
        %v883 = vpop.trf.xlu0
        %v884 = vpop.trf.xlu0
        %v885 = vpop.trf.xlu0
        %v886 = vpop.trf.xlu0
        %v887 = vpop.trf.xlu0
        %v888 = vpop.trf.xlu0
        %v889 = vpop.trf.xlu0
        %v890 = vpop.trf.xlu0
        %v891 = vpop.trf.xlu0
        %v892 = vpop.trf.xlu0
        %v893 = vpop.trf.xlu0
        %894 = vxpose.xlu0.b32.start [1/16] %v728, 128
        %895 = vxpose.xlu0.b32.cont [2/16] %v729, 128
        %896 = vxpose.xlu0.b32.cont [3/16] 0.0, 128
        %897 = vxpose.xlu0.b32.cont [4/16] 0.0, 128
        %898 = vxpose.xlu0.b32.cont [5/16] 0.0, 128
        %899 = vxpose.xlu0.b32.cont [6/16] 0.0, 128
        %900 = vxpose.xlu0.b32.cont [7/16] 0.0, 128
        %901 = vxpose.xlu0.b32.cont [8/16] 0.0, 128
        %902 = vxpose.xlu0.b32.cont [9/16] 0.0, 128
        %903 = vxpose.xlu0.b32.cont [10/16] 0.0, 128
        %904 = vxpose.xlu0.b32.cont [11/16] 0.0, 128
        %905 = vxpose.xlu0.b32.cont [12/16] 0.0, 128
        %906 = vxpose.xlu0.b32.cont [13/16] 0.0, 128
        %907 = vxpose.xlu0.b32.cont [14/16] 0.0, 128
        %908 = vxpose.xlu0.b32.cont [15/16] 0.0, 128
        %909 = vxpose.xlu0.b32.end [16/16] 0.0, 128
        %v910 = vpop.trf.xlu0
        %v911 = vpop.trf.xlu0
        %v912 = vpop.trf.xlu0
        %v913 = vpop.trf.xlu0
        %v914 = vpop.trf.xlu0
        %v915 = vpop.trf.xlu0
        %v916 = vpop.trf.xlu0
        %v917 = vpop.trf.xlu0
        %v918 = vpop.trf.xlu0
        %v919 = vpop.trf.xlu0
        %v920 = vpop.trf.xlu0
        %v921 = vpop.trf.xlu0
        %v922 = vpop.trf.xlu0
        %v923 = vpop.trf.xlu0
        %v924 = vpop.trf.xlu0
        %v925 = vpop.trf.xlu0
        %926 = vxpose.xlu0.b32.start [1/16] %v730, 128
        %927 = vxpose.xlu0.b32.cont [2/16] %v731, 128
        %928 = vxpose.xlu0.b32.cont [3/16] 0.0, 128
        %929 = vxpose.xlu0.b32.cont [4/16] 0.0, 128
        %930 = vxpose.xlu0.b32.cont [5/16] 0.0, 128
        %931 = vxpose.xlu0.b32.cont [6/16] 0.0, 128
        %932 = vxpose.xlu0.b32.cont [7/16] 0.0, 128
        %933 = vxpose.xlu0.b32.cont [8/16] 0.0, 128
        %934 = vxpose.xlu0.b32.cont [9/16] 0.0, 128
        %935 = vxpose.xlu0.b32.cont [10/16] 0.0, 128
        %936 = vxpose.xlu0.b32.cont [11/16] 0.0, 128
        %937 = vxpose.xlu0.b32.cont [12/16] 0.0, 128
        %938 = vxpose.xlu0.b32.cont [13/16] 0.0, 128
        %939 = vxpose.xlu0.b32.cont [14/16] 0.0, 128
        %940 = vxpose.xlu0.b32.cont [15/16] 0.0, 128
        %941 = vxpose.xlu0.b32.end [16/16] 0.0, 128
        %v942 = vpop.trf.xlu0
        %v943 = vpop.trf.xlu0
        %v944 = vpop.trf.xlu0
        %v945 = vpop.trf.xlu0
        %v946 = vpop.trf.xlu0
        %v947 = vpop.trf.xlu0
        %v948 = vpop.trf.xlu0
        %v949 = vpop.trf.xlu0
        %v950 = vpop.trf.xlu0
        %v951 = vpop.trf.xlu0
        %v952 = vpop.trf.xlu0
        %v953 = vpop.trf.xlu0
        %v954 = vpop.trf.xlu0
        %v955 = vpop.trf.xlu0
        %v956 = vpop.trf.xlu0
        %v957 = vpop.trf.xlu0
        %958 = vxpose.xlu0.b32.start [1/16] %v732, 128
        %959 = vxpose.xlu0.b32.cont [2/16] %v733, 128
        %960 = vxpose.xlu0.b32.cont [3/16] 0.0, 128
        %961 = vxpose.xlu0.b32.cont [4/16] 0.0, 128
        %962 = vxpose.xlu0.b32.cont [5/16] 0.0, 128
        %963 = vxpose.xlu0.b32.cont [6/16] 0.0, 128
        %964 = vxpose.xlu0.b32.cont [7/16] 0.0, 128
        %965 = vxpose.xlu0.b32.cont [8/16] 0.0, 128
        %966 = vxpose.xlu0.b32.cont [9/16] 0.0, 128
        %967 = vxpose.xlu0.b32.cont [10/16] 0.0, 128
        %968 = vxpose.xlu0.b32.cont [11/16] 0.0, 128
        %969 = vxpose.xlu0.b32.cont [12/16] 0.0, 128
        %970 = vxpose.xlu0.b32.cont [13/16] 0.0, 128
        %971 = vxpose.xlu0.b32.cont [14/16] 0.0, 128
        %972 = vxpose.xlu0.b32.cont [15/16] 0.0, 128
        %973 = vxpose.xlu0.b32.end [16/16] 0.0, 128
        %v974 = vpop.trf.xlu0
        %v975 = vpop.trf.xlu0
        %v976 = vpop.trf.xlu0
        %v977 = vpop.trf.xlu0
        %v978 = vpop.trf.xlu0
        %v979 = vpop.trf.xlu0
        %v980 = vpop.trf.xlu0
        %v981 = vpop.trf.xlu0
        %v982 = vpop.trf.xlu0
        %v983 = vpop.trf.xlu0
        %v984 = vpop.trf.xlu0
        %v985 = vpop.trf.xlu0
        %v986 = vpop.trf.xlu0
        %v987 = vpop.trf.xlu0
        %v988 = vpop.trf.xlu0
        %v989 = vpop.trf.xlu0
        %v990 = vld [vmem:[%s5] sm:$0xff]
        %v991 = vld [vmem:[%s5 + $0x8] sm:$0xff]
        %v992 = vld [vmem:[%s6] sm:$0x1]
        %v994 = vlaneseq
        %v995 = vshrl.u32 %v994, 7
        %v996 = vsub.s32 0, %v995
        %v997 = vrot.slane %v992, %v996
        %vm999 = vcmask 130048
        %v1001 = vsel %vm999, %v750, 0
        %v1004 = vsel %vm999, %v751, 0
        %v1007 = vsel %vm999, %v752, 0
        %v1010 = vsel %vm999, %v753, 0
        %v1013 = vsel %vm999, %v782, 0
        %v1016 = vsel %vm999, %v783, 0
        %v1019 = vsel %vm999, %v784, 0
        %v1022 = vsel %vm999, %v785, 0
        %v1025 = vsel %vm999, %v814, 0
        %v1028 = vsel %vm999, %v815, 0
        %v1031 = vsel %vm999, %v816, 0
        %v1034 = vsel %vm999, %v817, 0
        %v1037 = vsel %vm999, %v846, 0
        %v1040 = vsel %vm999, %v847, 0
        %v1043 = vsel %vm999, %v848, 0
        %v1046 = vsel %vm999, %v849, 0
        %v1049 = vsel %vm999, %v878, 0
        %v1052 = vsel %vm999, %v879, 0
        %v1055 = vsel %vm999, %v880, 0
        %v1058 = vsel %vm999, %v881, 0
        %v1061 = vsel %vm999, %v910, 0
        %v1064 = vsel %vm999, %v911, 0
        %v1067 = vsel %vm999, %v912, 0
        %v1070 = vsel %vm999, %v913, 0
        %v1073 = vsel %vm999, %v942, 0
        %v1076 = vsel %vm999, %v943, 0
        %v1079 = vsel %vm999, %v944, 0
        %v1082 = vsel %vm999, %v945, 0
        %v1085 = vsel %vm999, %v974, 0
        %v1088 = vsel %vm999, %v975, 0
        %v1091 = vsel %vm999, %v976, 0
        %v1094 = vsel %vm999, %v977, 0
        %1096 = vmatprep.subr.mxu0 0.0
        %1097 = vmatpush1.msra.mxu0 %v990
        %1098 = vmatprep.subr.mxu0 0.0
        %1099 = vmatpush1.msra.mxu0 %v991
        %1100 = vmatprep.subr.mxu0 0.0
        %1101 = vmatpush1.msra.mxu0 0.0
        %1102 = vmatprep.subr.mxu0 0.0
        %1103 = vmatpush1.msra.mxu0 0.0
        %1104 = vmatprep.subr.mxu0 0.0
        %1105 = vmatpush1.msra.mxu0 0.0
        %1106 = vmatprep.subr.mxu0 0.0
        %1107 = vmatpush1.msra.mxu0 0.0
        %1108 = vmatprep.subr.mxu0 0.0
        %1109 = vmatpush1.msra.mxu0 0.0
        %1110 = vmatprep.subr.mxu0 0.0
        %1111 = vmatpush1.msra.mxu0 0.0
        %1112 = vmatprep.subr.mxu0 0.0
        %1113 = vmatpush1.msra.mxu0 0.0
        %1114 = vmatprep.subr.mxu0 0.0
        %1115 = vmatpush1.msra.mxu0 0.0
        %1116 = vmatprep.subr.mxu0 0.0
        %1117 = vmatpush1.msra.mxu0 0.0
        %1118 = vmatprep.subr.mxu0 0.0
        %1119 = vmatpush1.msra.mxu0 0.0
        %1120 = vmatprep.subr.mxu0 0.0
        %1121 = vmatpush1.msra.mxu0 0.0
        %1122 = vmatprep.subr.mxu0 0.0
        %1123 = vmatpush1.msra.mxu0 0.0
        %1124 = vmatprep.subr.mxu0 0.0
        %1125 = vmatpush1.msra.mxu0 0.0
        %1126 = vmatprep.subr.mxu0 0.0
        %1127 = vmatpush1.msra.mxu0 0.0
        %1128 = vmatprep.subr.mxu0 0.0
        %1129 = vmatpush1.msra.mxu0 0.0
        %1130 = vmatprep.subr.mxu0 0.0
        %1131 = vmatpush1.msra.mxu0 0.0
        %1132 = vmatprep.subr.mxu0 0.0
        %1133 = vmatpush1.msra.mxu0 0.0
        %1134 = vmatprep.subr.mxu0 0.0
        %1135 = vmatpush1.msra.mxu0 0.0
        %1136 = vmatprep.subr.mxu0 0.0
        %1137 = vmatpush1.msra.mxu0 0.0
        %1138 = vmatprep.subr.mxu0 0.0
        %1139 = vmatpush1.msra.mxu0 0.0
        %1140 = vmatprep.subr.mxu0 0.0
        %1141 = vmatpush1.msra.mxu0 0.0
        %1142 = vmatprep.subr.mxu0 0.0
        %1143 = vmatpush1.msra.mxu0 0.0
        %1144 = vmatprep.subr.mxu0 0.0
        %1145 = vmatpush1.msra.mxu0 0.0
        %1146 = vmatprep.subr.mxu0 0.0
        %1147 = vmatpush1.msra.mxu0 0.0
        %1148 = vmatprep.subr.mxu0 0.0
        %1149 = vmatpush1.msra.mxu0 0.0
        %1150 = vmatprep.subr.mxu0 0.0
        %1151 = vmatpush1.msra.mxu0 0.0
        %1152 = vmatprep.subr.mxu0 0.0
        %1153 = vmatpush1.msra.mxu0 0.0
        %1154 = vmatprep.subr.mxu0 0.0
        %1155 = vmatpush1.msra.mxu0 0.0
        %1156 = vmatprep.subr.mxu0 0.0
        %1157 = vmatpush1.msra.mxu0 0.0
        %1158 = vmatprep.subr.mxu0 0.0
        %1159 = vmatpush1.msra.mxu0 0.0
        %1160 = vmatprep.mubr.f32.mxu0 0.0
        %1161 = vmatmul.mubr.f32.gmra.mrb[0].mxu0 %v1001
        %v1162 = vpop.f32.mrb[0].mxu0
        %v1163 = vadd.f32 %v997, %v1162
        %v1164 = vpop.f32.mrb[0].mxu0
        %1165 = vmatprep.mubr.f32.mxu0 0.0
        %1166 = vmatmul.mubr.f32.gmra.mrb[0].mxu0 %v1004
        %v1167 = vpop.f32.mrb[0].mxu0
        %v1168 = vadd.f32 %v997, %v1167
        %v1169 = vpop.f32.mrb[0].mxu0
        %1170 = vmatprep.mubr.f32.mxu0 0.0
        %1171 = vmatmul.mubr.f32.gmra.mrb[0].mxu0 %v1007
        %v1172 = vpop.f32.mrb[0].mxu0
        %v1173 = vadd.f32 %v997, %v1172
        %v1174 = vpop.f32.mrb[0].mxu0
        %1175 = vmatprep.mubr.f32.mxu0 0.0
        %1176 = vmatmul.mubr.f32.gmra.mrb[0].mxu0 %v1010
        %v1177 = vpop.f32.mrb[0].mxu0
        %v1178 = vadd.f32 %v997, %v1177
        %v1179 = vpop.f32.mrb[0].mxu0
        %1180 = vmatprep.mubr.f32.mxu0 0.0
        %1181 = vmatmul.mubr.f32.gmra.mrb[0].mxu0 %v1013
        %v1182 = vpop.f32.mrb[0].mxu0
        %v1183 = vadd.f32 %v997, %v1182
        %v1184 = vpop.f32.mrb[0].mxu0
        %1185 = vmatprep.mubr.f32.mxu0 0.0
        %1186 = vmatmul.mubr.f32.gmra.mrb[0].mxu0 %v1016
        %v1187 = vpop.f32.mrb[0].mxu0
        %v1188 = vadd.f32 %v997, %v1187
        %v1189 = vpop.f32.mrb[0].mxu0
        %1190 = vmatprep.mubr.f32.mxu0 0.0
        %1191 = vmatmul.mubr.f32.gmra.mrb[0].mxu0 %v1019
        %v1192 = vpop.f32.mrb[0].mxu0
        %v1193 = vadd.f32 %v997, %v1192
        %v1194 = vpop.f32.mrb[0].mxu0
        %1195 = vmatprep.mubr.f32.mxu0 0.0
        %1196 = vmatmul.mubr.f32.gmra.mrb[0].mxu0 %v1022
        %v1197 = vpop.f32.mrb[0].mxu0
        %v1198 = vadd.f32 %v997, %v1197
        %v1199 = vpop.f32.mrb[0].mxu0
        %1200 = vmatprep.mubr.f32.mxu0 0.0
        %1201 = vmatmul.mubr.f32.gmra.mrb[0].mxu0 %v1025
        %v1202 = vpop.f32.mrb[0].mxu0
        %v1203 = vadd.f32 %v997, %v1202
        %v1204 = vpop.f32.mrb[0].mxu0
        %1205 = vmatprep.mubr.f32.mxu0 0.0
        %1206 = vmatmul.mubr.f32.gmra.mrb[0].mxu0 %v1028
        %v1207 = vpop.f32.mrb[0].mxu0
        %v1208 = vadd.f32 %v997, %v1207
        %v1209 = vpop.f32.mrb[0].mxu0
        %1210 = vmatprep.mubr.f32.mxu0 0.0
        %1211 = vmatmul.mubr.f32.gmra.mrb[0].mxu0 %v1031
        %v1212 = vpop.f32.mrb[0].mxu0
        %v1213 = vadd.f32 %v997, %v1212
        %v1214 = vpop.f32.mrb[0].mxu0
        %1215 = vmatprep.mubr.f32.mxu0 0.0
        %1216 = vmatmul.mubr.f32.gmra.mrb[0].mxu0 %v1034
        %v1217 = vpop.f32.mrb[0].mxu0
        %v1218 = vadd.f32 %v997, %v1217
        %v1219 = vpop.f32.mrb[0].mxu0
        %1220 = vmatprep.mubr.f32.mxu0 0.0
        %1221 = vmatmul.mubr.f32.gmra.mrb[0].mxu0 %v1037
        %v1222 = vpop.f32.mrb[0].mxu0
        %v1223 = vadd.f32 %v997, %v1222
        %v1224 = vpop.f32.mrb[0].mxu0
        %1225 = vmatprep.mubr.f32.mxu0 0.0
        %1226 = vmatmul.mubr.f32.gmra.mrb[0].mxu0 %v1040
        %v1227 = vpop.f32.mrb[0].mxu0
        %v1228 = vadd.f32 %v997, %v1227
        %v1229 = vpop.f32.mrb[0].mxu0
        %1230 = vmatprep.mubr.f32.mxu0 0.0
        %1231 = vmatmul.mubr.f32.gmra.mrb[0].mxu0 %v1043
        %v1232 = vpop.f32.mrb[0].mxu0
        %v1233 = vadd.f32 %v997, %v1232
        %v1234 = vpop.f32.mrb[0].mxu0
        %1235 = vmatprep.mubr.f32.mxu0 0.0
        %1236 = vmatmul.mubr.f32.gmra.mrb[0].mxu0 %v1046
        %v1237 = vpop.f32.mrb[0].mxu0
        %v1238 = vadd.f32 %v997, %v1237
        %v1239 = vpop.f32.mrb[0].mxu0
        %1240 = vmatprep.mubr.f32.mxu0 0.0
        %1241 = vmatmul.mubr.f32.gmra.mrb[0].mxu0 %v1049
        %v1242 = vpop.f32.mrb[0].mxu0
        %v1243 = vadd.f32 %v997, %v1242
        %v1244 = vpop.f32.mrb[0].mxu0
        %1245 = vmatprep.mubr.f32.mxu0 0.0
        %1246 = vmatmul.mubr.f32.gmra.mrb[0].mxu0 %v1052
        %v1247 = vpop.f32.mrb[0].mxu0
        %v1248 = vadd.f32 %v997, %v1247
        %v1249 = vpop.f32.mrb[0].mxu0
        %1250 = vmatprep.mubr.f32.mxu0 0.0
        %1251 = vmatmul.mubr.f32.gmra.mrb[0].mxu0 %v1055
        %v1252 = vpop.f32.mrb[0].mxu0
        %v1253 = vadd.f32 %v997, %v1252
        %v1254 = vpop.f32.mrb[0].mxu0
        %1255 = vmatprep.mubr.f32.mxu0 0.0
        %1256 = vmatmul.mubr.f32.gmra.mrb[0].mxu0 %v1058
        %v1257 = vpop.f32.mrb[0].mxu0
        %v1258 = vadd.f32 %v997, %v1257
        %v1259 = vpop.f32.mrb[0].mxu0
        %1260 = vmatprep.mubr.f32.mxu0 0.0
        %1261 = vmatmul.mubr.f32.gmra.mrb[0].mxu0 %v1061
        %v1262 = vpop.f32.mrb[0].mxu0
        %v1263 = vadd.f32 %v997, %v1262
        %v1264 = vpop.f32.mrb[0].mxu0
        %1265 = vmatprep.mubr.f32.mxu0 0.0
        %1266 = vmatmul.mubr.f32.gmra.mrb[0].mxu0 %v1064
        %v1267 = vpop.f32.mrb[0].mxu0
        %v1268 = vadd.f32 %v997, %v1267
        %v1269 = vpop.f32.mrb[0].mxu0
        %1270 = vmatprep.mubr.f32.mxu0 0.0
        %1271 = vmatmul.mubr.f32.gmra.mrb[0].mxu0 %v1067
        %v1272 = vpop.f32.mrb[0].mxu0
        %v1273 = vadd.f32 %v997, %v1272
        %v1274 = vpop.f32.mrb[0].mxu0
        %1275 = vmatprep.mubr.f32.mxu0 0.0
        %1276 = vmatmul.mubr.f32.gmra.mrb[0].mxu0 %v1070
        %v1277 = vpop.f32.mrb[0].mxu0
        %v1278 = vadd.f32 %v997, %v1277
        %v1279 = vpop.f32.mrb[0].mxu0
        %1280 = vmatprep.mubr.f32.mxu0 0.0
        %1281 = vmatmul.mubr.f32.gmra.mrb[0].mxu0 %v1073
        %v1282 = vpop.f32.mrb[0].mxu0
        %v1283 = vadd.f32 %v997, %v1282
        %v1284 = vpop.f32.mrb[0].mxu0
        %1285 = vmatprep.mubr.f32.mxu0 0.0
        %1286 = vmatmul.mubr.f32.gmra.mrb[0].mxu0 %v1076
        %v1287 = vpop.f32.mrb[0].mxu0
        %v1288 = vadd.f32 %v997, %v1287
        %v1289 = vpop.f32.mrb[0].mxu0
        %1290 = vmatprep.mubr.f32.mxu0 0.0
        %1291 = vmatmul.mubr.f32.gmra.mrb[0].mxu0 %v1079
        %v1292 = vpop.f32.mrb[0].mxu0
        %v1293 = vadd.f32 %v997, %v1292
        %v1294 = vpop.f32.mrb[0].mxu0
        %1295 = vmatprep.mubr.f32.mxu0 0.0
        %1296 = vmatmul.mubr.f32.gmra.mrb[0].mxu0 %v1082
        %v1297 = vpop.f32.mrb[0].mxu0
        %v1298 = vadd.f32 %v997, %v1297
        %v1299 = vpop.f32.mrb[0].mxu0
        %1300 = vmatprep.mubr.f32.mxu0 0.0
        %1301 = vmatmul.mubr.f32.gmra.mrb[0].mxu0 %v1085
        %v1302 = vpop.f32.mrb[0].mxu0
        %v1303 = vadd.f32 %v997, %v1302
        %v1304 = vpop.f32.mrb[0].mxu0
        %1305 = vmatprep.mubr.f32.mxu0 0.0
        %1306 = vmatmul.mubr.f32.gmra.mrb[0].mxu0 %v1088
        %v1307 = vpop.f32.mrb[0].mxu0
        %v1308 = vadd.f32 %v997, %v1307
        %v1309 = vpop.f32.mrb[0].mxu0
        %1310 = vmatprep.mubr.f32.mxu0 0.0
        %1311 = vmatmul.mubr.f32.gmra.mrb[0].mxu0 %v1091
        %v1312 = vpop.f32.mrb[0].mxu0
        %v1313 = vadd.f32 %v997, %v1312
        %v1314 = vpop.f32.mrb[0].mxu0
        %1315 = vmatprep.mubr.f32.mxu0 0.0
        %1316 = vmatmul.mubr.f32.gmra.mrb[0].mxu0 %v1094
        %v1317 = vpop.f32.mrb[0].mxu0
        %v1318 = vadd.f32 %v997, %v1317
        %v1319 = vpop.f32.mrb[0].mxu0
        %1320 = vdwg.mxu0
        %v1321 = vmul.f32 %v1163, 0.5
        %v1322 = vmul.f32 %v1168, 0.5
        %v1323 = vmul.f32 %v1173, 0.5
        %v1324 = vmul.f32 %v1178, 0.5
        %v1325 = vmul.f32 %v1183, 0.5
        %v1326 = vmul.f32 %v1188, 0.5
        %v1327 = vmul.f32 %v1193, 0.5
        %v1328 = vmul.f32 %v1198, 0.5
        %v1329 = vmul.f32 %v1203, 0.5
        %v1330 = vmul.f32 %v1208, 0.5
        %v1331 = vmul.f32 %v1213, 0.5
        %v1332 = vmul.f32 %v1218, 0.5
        %v1333 = vmul.f32 %v1223, 0.5
        %v1334 = vmul.f32 %v1228, 0.5
        %v1335 = vmul.f32 %v1233, 0.5
        %v1336 = vmul.f32 %v1238, 0.5
        %v1337 = vmul.f32 %v1243, 0.5
        %v1338 = vmul.f32 %v1248, 0.5
        %v1339 = vmul.f32 %v1253, 0.5
        %v1340 = vmul.f32 %v1258, 0.5
        %v1341 = vmul.f32 %v1263, 0.5
        %v1342 = vmul.f32 %v1268, 0.5
        %v1343 = vmul.f32 %v1273, 0.5
        %v1344 = vmul.f32 %v1278, 0.5
        %v1345 = vmul.f32 %v1283, 0.5
        %v1346 = vmul.f32 %v1288, 0.5
        %v1347 = vmul.f32 %v1293, 0.5
        %v1348 = vmul.f32 %v1298, 0.5
        %v1349 = vmul.f32 %v1303, 0.5
        %v1350 = vmul.f32 %v1308, 0.5
        %v1351 = vmul.f32 %v1313, 0.5
        %v1352 = vmul.f32 %v1318, 0.5
        %v1353 = vmul.f32 %v1163, 0.70710677
        %v1354 = vmul.f32 %v1168, 0.70710677
        %v1355 = vmul.f32 %v1173, 0.70710677
        %v1356 = vmul.f32 %v1178, 0.70710677
        %v1357 = vmul.f32 %v1183, 0.70710677
        %v1358 = vmul.f32 %v1188, 0.70710677
        %v1359 = vmul.f32 %v1193, 0.70710677
        %v1360 = vmul.f32 %v1198, 0.70710677
        %v1361 = vmul.f32 %v1203, 0.70710677
        %v1362 = vmul.f32 %v1208, 0.70710677
        %v1363 = vmul.f32 %v1213, 0.70710677
        %v1364 = vmul.f32 %v1218, 0.70710677
        %v1365 = vmul.f32 %v1223, 0.70710677
        %v1366 = vmul.f32 %v1228, 0.70710677
        %v1367 = vmul.f32 %v1233, 0.70710677
        %v1368 = vmul.f32 %v1238, 0.70710677
        %v1369 = vmul.f32 %v1243, 0.70710677
        %v1370 = vmul.f32 %v1248, 0.70710677
        %v1371 = vmul.f32 %v1253, 0.70710677
        %v1372 = vmul.f32 %v1258, 0.70710677
        %v1373 = vmul.f32 %v1263, 0.70710677
        %v1374 = vmul.f32 %v1268, 0.70710677
        %v1375 = vmul.f32 %v1273, 0.70710677
        %v1376 = vmul.f32 %v1278, 0.70710677
        %v1377 = vmul.f32 %v1283, 0.70710677
        %v1378 = vmul.f32 %v1288, 0.70710677
        %v1379 = vmul.f32 %v1293, 0.70710677
        %v1380 = vmul.f32 %v1298, 0.70710677
        %v1381 = vmul.f32 %v1303, 0.70710677
        %v1382 = vmul.f32 %v1308, 0.70710677
        %v1383 = vmul.f32 %v1313, 0.70710677
        %v1384 = vmul.f32 %v1318, 0.70710677
        %v1385 = verf.f32.pop %v1353
        %v1386 = verf.f32.pop %v1354
        %v1387 = verf.f32.pop %v1355
        %v1388 = verf.f32.pop %v1356
        %v1389 = verf.f32.pop %v1357
        %v1390 = verf.f32.pop %v1358
        %v1391 = verf.f32.pop %v1359
        %v1392 = verf.f32.pop %v1360
        %v1393 = verf.f32.pop %v1361
        %v1394 = verf.f32.pop %v1362
        %v1395 = verf.f32.pop %v1363
        %v1396 = verf.f32.pop %v1364
        %v1397 = verf.f32.pop %v1365
        %v1398 = verf.f32.pop %v1366
        %v1399 = verf.f32.pop %v1367
        %v1400 = verf.f32.pop %v1368
        %v1401 = verf.f32.pop %v1369
        %v1402 = verf.f32.pop %v1370
        %v1403 = verf.f32.pop %v1371
        %v1404 = verf.f32.pop %v1372
        %v1405 = verf.f32.pop %v1373
        %v1406 = verf.f32.pop %v1374
        %v1407 = verf.f32.pop %v1375
        %v1408 = verf.f32.pop %v1376
        %v1409 = verf.f32.pop %v1377
        %v1410 = verf.f32.pop %v1378
        %v1411 = verf.f32.pop %v1379
        %v1412 = verf.f32.pop %v1380
        %v1413 = verf.f32.pop %v1381
        %v1414 = verf.f32.pop %v1382
        %v1415 = verf.f32.pop %v1383
        %v1416 = verf.f32.pop %v1384
        %v1417 = vadd.f32 %v1385, 1.0
        %v1418 = vadd.f32 %v1386, 1.0
        %v1419 = vadd.f32 %v1387, 1.0
        %v1420 = vadd.f32 %v1388, 1.0
        %v1421 = vadd.f32 %v1389, 1.0
        %v1422 = vadd.f32 %v1390, 1.0
        %v1423 = vadd.f32 %v1391, 1.0
        %v1424 = vadd.f32 %v1392, 1.0
        %v1425 = vadd.f32 %v1393, 1.0
        %v1426 = vadd.f32 %v1394, 1.0
        %v1427 = vadd.f32 %v1395, 1.0
        %v1428 = vadd.f32 %v1396, 1.0
        %v1429 = vadd.f32 %v1397, 1.0
        %v1430 = vadd.f32 %v1398, 1.0
        %v1431 = vadd.f32 %v1399, 1.0
        %v1432 = vadd.f32 %v1400, 1.0
        %v1433 = vadd.f32 %v1401, 1.0
        %v1434 = vadd.f32 %v1402, 1.0
        %v1435 = vadd.f32 %v1403, 1.0
        %v1436 = vadd.f32 %v1404, 1.0
        %v1437 = vadd.f32 %v1405, 1.0
        %v1438 = vadd.f32 %v1406, 1.0
        %v1439 = vadd.f32 %v1407, 1.0
        %v1440 = vadd.f32 %v1408, 1.0
        %v1441 = vadd.f32 %v1409, 1.0
        %v1442 = vadd.f32 %v1410, 1.0
        %v1443 = vadd.f32 %v1411, 1.0
        %v1444 = vadd.f32 %v1412, 1.0
        %v1445 = vadd.f32 %v1413, 1.0
        %v1446 = vadd.f32 %v1414, 1.0
        %v1447 = vadd.f32 %v1415, 1.0
        %v1448 = vadd.f32 %v1416, 1.0
        %v1449 = vmul.f32 %v1321, %v1417
        %v1450 = vmul.f32 %v1322, %v1418
        %v1451 = vmul.f32 %v1323, %v1419
        %v1452 = vmul.f32 %v1324, %v1420
        %v1453 = vmul.f32 %v1325, %v1421
        %v1454 = vmul.f32 %v1326, %v1422
        %v1455 = vmul.f32 %v1327, %v1423
        %v1456 = vmul.f32 %v1328, %v1424
        %v1457 = vmul.f32 %v1329, %v1425
        %v1458 = vmul.f32 %v1330, %v1426
        %v1459 = vmul.f32 %v1331, %v1427
        %v1460 = vmul.f32 %v1332, %v1428
        %v1461 = vmul.f32 %v1333, %v1429
        %v1462 = vmul.f32 %v1334, %v1430
        %v1463 = vmul.f32 %v1335, %v1431
        %v1464 = vmul.f32 %v1336, %v1432
        %v1465 = vmul.f32 %v1337, %v1433
        %v1466 = vmul.f32 %v1338, %v1434
        %v1467 = vmul.f32 %v1339, %v1435
        %v1468 = vmul.f32 %v1340, %v1436
        %v1469 = vmul.f32 %v1341, %v1437
        %v1470 = vmul.f32 %v1342, %v1438
        %v1471 = vmul.f32 %v1343, %v1439
        %v1472 = vmul.f32 %v1344, %v1440
        %v1473 = vmul.f32 %v1345, %v1441
        %v1474 = vmul.f32 %v1346, %v1442
        %v1475 = vmul.f32 %v1347, %v1443
        %v1476 = vmul.f32 %v1348, %v1444
        %v1477 = vmul.f32 %v1349, %v1445
        %v1478 = vmul.f32 %v1350, %v1446
        %v1479 = vmul.f32 %v1351, %v1447
        %v1480 = vmul.f32 %v1352, %v1448
        %v1481 = vld [vmem:[%s7] sm:$0xff]
        %v1482 = vld [vmem:[%s7 + $0x8] sm:$0xff]
        %v1483 = vld [vmem:[%s7 + $0x10] sm:$0xff]
        %v1484 = vld [vmem:[%s7 + $0x18] sm:$0xff]
        %v1485 = vld [vmem:[%s7 + $0x20] sm:$0xff]
        %v1486 = vld [vmem:[%s7 + $0x28] sm:$0xff]
        %v1487 = vld [vmem:[%s7 + $0x30] sm:$0xff]
        %v1488 = vld [vmem:[%s7 + $0x38] sm:$0xff]
        %v1489 = vld [vmem:[%s8] sm:$0x1]
        %v1491 = vlaneseq
        %v1492 = vshrl.u32 %v1491, 7
        %v1493 = vsub.s32 0, %v1492
        %v1494 = vrot.slane %v1489, %v1493
        %vm1496 = vcmask 523264
        %v1498 = vsel %vm1496, %v1449, 0
        %v1501 = vsel %vm1496, %v1450, 0
        %v1504 = vsel %vm1496, %v1451, 0
        %v1507 = vsel %vm1496, %v1452, 0
        %v1510 = vsel %vm1496, %v1453, 0
        %v1513 = vsel %vm1496, %v1454, 0
        %v1516 = vsel %vm1496, %v1455, 0
        %v1519 = vsel %vm1496, %v1456, 0
        %v1522 = vsel %vm1496, %v1457, 0
        %v1525 = vsel %vm1496, %v1458, 0
        %v1528 = vsel %vm1496, %v1459, 0
        %v1531 = vsel %vm1496, %v1460, 0
        %v1534 = vsel %vm1496, %v1461, 0
        %v1537 = vsel %vm1496, %v1462, 0
        %v1540 = vsel %vm1496, %v1463, 0
        %v1543 = vsel %vm1496, %v1464, 0
        %v1546 = vsel %vm1496, %v1465, 0
        %v1549 = vsel %vm1496, %v1466, 0
        %v1552 = vsel %vm1496, %v1467, 0
        %v1555 = vsel %vm1496, %v1468, 0
        %v1558 = vsel %vm1496, %v1469, 0
        %v1561 = vsel %vm1496, %v1470, 0
        %v1564 = vsel %vm1496, %v1471, 0
        %v1567 = vsel %vm1496, %v1472, 0
        %v1570 = vsel %vm1496, %v1473, 0
        %v1573 = vsel %vm1496, %v1474, 0
        %v1576 = vsel %vm1496, %v1475, 0
        %v1579 = vsel %vm1496, %v1476, 0
        %v1582 = vsel %vm1496, %v1477, 0
        %v1585 = vsel %vm1496, %v1478, 0
        %v1588 = vsel %vm1496, %v1479, 0
        %v1591 = vsel %vm1496, %v1480, 0
        %1593 = vmatprep.subr.mxu0 0.0
        %1594 = vmatpush1.msra.mxu0 %v1481
        %1595 = vmatprep.subr.mxu0 0.0
        %1596 = vmatpush1.msra.mxu0 %v1482
        %1597 = vmatprep.subr.mxu0 0.0
        %1598 = vmatpush1.msra.mxu0 %v1483
        %1599 = vmatprep.subr.mxu0 0.0
        %1600 = vmatpush1.msra.mxu0 %v1484
        %1601 = vmatprep.subr.mxu0 0.0
        %1602 = vmatpush1.msra.mxu0 %v1485
        %1603 = vmatprep.subr.mxu0 0.0
        %1604 = vmatpush1.msra.mxu0 %v1486
        %1605 = vmatprep.subr.mxu0 0.0
        %1606 = vmatpush1.msra.mxu0 %v1487
        %1607 = vmatprep.subr.mxu0 0.0
        %1608 = vmatpush1.msra.mxu0 %v1488
        %1609 = vmatprep.subr.mxu0 0.0
        %1610 = vmatpush1.msra.mxu0 0.0
        %1611 = vmatprep.subr.mxu0 0.0
        %1612 = vmatpush1.msra.mxu0 0.0
        %1613 = vmatprep.subr.mxu0 0.0
        %1614 = vmatpush1.msra.mxu0 0.0
        %1615 = vmatprep.subr.mxu0 0.0
        %1616 = vmatpush1.msra.mxu0 0.0
        %1617 = vmatprep.subr.mxu0 0.0
        %1618 = vmatpush1.msra.mxu0 0.0
        %1619 = vmatprep.subr.mxu0 0.0
        %1620 = vmatpush1.msra.mxu0 0.0
        %1621 = vmatprep.subr.mxu0 0.0
        %1622 = vmatpush1.msra.mxu0 0.0
        %1623 = vmatprep.subr.mxu0 0.0
        %1624 = vmatpush1.msra.mxu0 0.0
        %1625 = vmatprep.subr.mxu0 0.0
        %1626 = vmatpush1.msra.mxu0 0.0
        %1627 = vmatprep.subr.mxu0 0.0
        %1628 = vmatpush1.msra.mxu0 0.0
        %1629 = vmatprep.subr.mxu0 0.0
        %1630 = vmatpush1.msra.mxu0 0.0
        %1631 = vmatprep.subr.mxu0 0.0
        %1632 = vmatpush1.msra.mxu0 0.0
        %1633 = vmatprep.subr.mxu0 0.0
        %1634 = vmatpush1.msra.mxu0 0.0
        %1635 = vmatprep.subr.mxu0 0.0
        %1636 = vmatpush1.msra.mxu0 0.0
        %1637 = vmatprep.subr.mxu0 0.0
        %1638 = vmatpush1.msra.mxu0 0.0
        %1639 = vmatprep.subr.mxu0 0.0
        %1640 = vmatpush1.msra.mxu0 0.0
        %1641 = vmatprep.subr.mxu0 0.0
        %1642 = vmatpush1.msra.mxu0 0.0
        %1643 = vmatprep.subr.mxu0 0.0
        %1644 = vmatpush1.msra.mxu0 0.0
        %1645 = vmatprep.subr.mxu0 0.0
        %1646 = vmatpush1.msra.mxu0 0.0
        %1647 = vmatprep.subr.mxu0 0.0
        %1648 = vmatpush1.msra.mxu0 0.0
        %1649 = vmatprep.subr.mxu0 0.0
        %1650 = vmatpush1.msra.mxu0 0.0
        %1651 = vmatprep.subr.mxu0 0.0
        %1652 = vmatpush1.msra.mxu0 0.0
        %1653 = vmatprep.subr.mxu0 0.0
        %1654 = vmatpush1.msra.mxu0 0.0
        %1655 = vmatprep.subr.mxu0 0.0
        %1656 = vmatpush1.msra.mxu0 0.0
        %1657 = vmatprep.mubr.f32.mxu0 0.0
        %1658 = vmatmul.mubr.f32.gmra.mrb[0].mxu0 %v1498
        %v1659 = vpop.f32.mrb[0].mxu0
        %v1660 = vadd.f32 %v1494, %v1659
        %v1661 = vpop.f32.mrb[0].mxu0
        %1662 = vmatprep.mubr.f32.mxu0 0.0
        %1663 = vmatmul.mubr.f32.gmra.mrb[0].mxu0 %v1501
        %v1664 = vpop.f32.mrb[0].mxu0
        %v1665 = vadd.f32 %v1494, %v1664
        %v1666 = vpop.f32.mrb[0].mxu0
        %1667 = vmatprep.mubr.f32.mxu0 0.0
        %1668 = vmatmul.mubr.f32.gmra.mrb[0].mxu0 %v1504
        %v1669 = vpop.f32.mrb[0].mxu0
        %v1670 = vadd.f32 %v1494, %v1669
        %v1671 = vpop.f32.mrb[0].mxu0
        %1672 = vmatprep.mubr.f32.mxu0 0.0
        %1673 = vmatmul.mubr.f32.gmra.mrb[0].mxu0 %v1507
        %v1674 = vpop.f32.mrb[0].mxu0
        %v1675 = vadd.f32 %v1494, %v1674
        %v1676 = vpop.f32.mrb[0].mxu0
        %1677 = vmatprep.mubr.f32.mxu0 0.0
        %1678 = vmatmul.mubr.f32.gmra.mrb[0].mxu0 %v1510
        %v1679 = vpop.f32.mrb[0].mxu0
        %v1680 = vadd.f32 %v1494, %v1679
        %v1681 = vpop.f32.mrb[0].mxu0
        %1682 = vmatprep.mubr.f32.mxu0 0.0
        %1683 = vmatmul.mubr.f32.gmra.mrb[0].mxu0 %v1513
        %v1684 = vpop.f32.mrb[0].mxu0
        %v1685 = vadd.f32 %v1494, %v1684
        %v1686 = vpop.f32.mrb[0].mxu0
        %1687 = vmatprep.mubr.f32.mxu0 0.0
        %1688 = vmatmul.mubr.f32.gmra.mrb[0].mxu0 %v1516
        %v1689 = vpop.f32.mrb[0].mxu0
        %v1690 = vadd.f32 %v1494, %v1689
        %v1691 = vpop.f32.mrb[0].mxu0
        %1692 = vmatprep.mubr.f32.mxu0 0.0
        %1693 = vmatmul.mubr.f32.gmra.mrb[0].mxu0 %v1519
        %v1694 = vpop.f32.mrb[0].mxu0
        %v1695 = vadd.f32 %v1494, %v1694
        %v1696 = vpop.f32.mrb[0].mxu0
        %1697 = vmatprep.mubr.f32.mxu0 0.0
        %1698 = vmatmul.mubr.f32.gmra.mrb[0].mxu0 %v1522
        %v1699 = vpop.f32.mrb[0].mxu0
        %v1700 = vadd.f32 %v1494, %v1699
        %v1701 = vpop.f32.mrb[0].mxu0
        %1702 = vmatprep.mubr.f32.mxu0 0.0
        %1703 = vmatmul.mubr.f32.gmra.mrb[0].mxu0 %v1525
        %v1704 = vpop.f32.mrb[0].mxu0
        %v1705 = vadd.f32 %v1494, %v1704
        %v1706 = vpop.f32.mrb[0].mxu0
        %1707 = vmatprep.mubr.f32.mxu0 0.0
        %1708 = vmatmul.mubr.f32.gmra.mrb[0].mxu0 %v1528
        %v1709 = vpop.f32.mrb[0].mxu0
        %v1710 = vadd.f32 %v1494, %v1709
        %v1711 = vpop.f32.mrb[0].mxu0
        %1712 = vmatprep.mubr.f32.mxu0 0.0
        %1713 = vmatmul.mubr.f32.gmra.mrb[0].mxu0 %v1531
        %v1714 = vpop.f32.mrb[0].mxu0
        %v1715 = vadd.f32 %v1494, %v1714
        %v1716 = vpop.f32.mrb[0].mxu0
        %1717 = vmatprep.mubr.f32.mxu0 0.0
        %1718 = vmatmul.mubr.f32.gmra.mrb[0].mxu0 %v1534
        %v1719 = vpop.f32.mrb[0].mxu0
        %v1720 = vadd.f32 %v1494, %v1719
        %v1721 = vpop.f32.mrb[0].mxu0
        %1722 = vmatprep.mubr.f32.mxu0 0.0
        %1723 = vmatmul.mubr.f32.gmra.mrb[0].mxu0 %v1537
        %v1724 = vpop.f32.mrb[0].mxu0
        %v1725 = vadd.f32 %v1494, %v1724
        %v1726 = vpop.f32.mrb[0].mxu0
        %1727 = vmatprep.mubr.f32.mxu0 0.0
        %1728 = vmatmul.mubr.f32.gmra.mrb[0].mxu0 %v1540
        %v1729 = vpop.f32.mrb[0].mxu0
        %v1730 = vadd.f32 %v1494, %v1729
        %v1731 = vpop.f32.mrb[0].mxu0
        %1732 = vmatprep.mubr.f32.mxu0 0.0
        %1733 = vmatmul.mubr.f32.gmra.mrb[0].mxu0 %v1543
        %v1734 = vpop.f32.mrb[0].mxu0
        %v1735 = vadd.f32 %v1494, %v1734
        %v1736 = vpop.f32.mrb[0].mxu0
        %1737 = vmatprep.mubr.f32.mxu0 0.0
        %1738 = vmatmul.mubr.f32.gmra.mrb[0].mxu0 %v1546
        %v1739 = vpop.f32.mrb[0].mxu0
        %v1740 = vadd.f32 %v1494, %v1739
        %v1741 = vpop.f32.mrb[0].mxu0
        %1742 = vmatprep.mubr.f32.mxu0 0.0
        %1743 = vmatmul.mubr.f32.gmra.mrb[0].mxu0 %v1549
        %v1744 = vpop.f32.mrb[0].mxu0
        %v1745 = vadd.f32 %v1494, %v1744
        %v1746 = vpop.f32.mrb[0].mxu0
        %1747 = vmatprep.mubr.f32.mxu0 0.0
        %1748 = vmatmul.mubr.f32.gmra.mrb[0].mxu0 %v1552
        %v1749 = vpop.f32.mrb[0].mxu0
        %v1750 = vadd.f32 %v1494, %v1749
        %v1751 = vpop.f32.mrb[0].mxu0
        %1752 = vmatprep.mubr.f32.mxu0 0.0
        %1753 = vmatmul.mubr.f32.gmra.mrb[0].mxu0 %v1555
        %v1754 = vpop.f32.mrb[0].mxu0
        %v1755 = vadd.f32 %v1494, %v1754
        %v1756 = vpop.f32.mrb[0].mxu0
        %1757 = vmatprep.mubr.f32.mxu0 0.0
        %1758 = vmatmul.mubr.f32.gmra.mrb[0].mxu0 %v1558
        %v1759 = vpop.f32.mrb[0].mxu0
        %v1760 = vadd.f32 %v1494, %v1759
        %v1761 = vpop.f32.mrb[0].mxu0
        %1762 = vmatprep.mubr.f32.mxu0 0.0
        %1763 = vmatmul.mubr.f32.gmra.mrb[0].mxu0 %v1561
        %v1764 = vpop.f32.mrb[0].mxu0
        %v1765 = vadd.f32 %v1494, %v1764
        %v1766 = vpop.f32.mrb[0].mxu0
        %1767 = vmatprep.mubr.f32.mxu0 0.0
        %1768 = vmatmul.mubr.f32.gmra.mrb[0].mxu0 %v1564
        %v1769 = vpop.f32.mrb[0].mxu0
        %v1770 = vadd.f32 %v1494, %v1769
        %v1771 = vpop.f32.mrb[0].mxu0
        %1772 = vmatprep.mubr.f32.mxu0 0.0
        %1773 = vmatmul.mubr.f32.gmra.mrb[0].mxu0 %v1567
        %v1774 = vpop.f32.mrb[0].mxu0
        %v1775 = vadd.f32 %v1494, %v1774
        %v1776 = vpop.f32.mrb[0].mxu0
        %1777 = vmatprep.mubr.f32.mxu0 0.0
        %1778 = vmatmul.mubr.f32.gmra.mrb[0].mxu0 %v1570
        %v1779 = vpop.f32.mrb[0].mxu0
        %v1780 = vadd.f32 %v1494, %v1779
        %v1781 = vpop.f32.mrb[0].mxu0
        %1782 = vmatprep.mubr.f32.mxu0 0.0
        %1783 = vmatmul.mubr.f32.gmra.mrb[0].mxu0 %v1573
        %v1784 = vpop.f32.mrb[0].mxu0
        %v1785 = vadd.f32 %v1494, %v1784
        %v1786 = vpop.f32.mrb[0].mxu0
        %1787 = vmatprep.mubr.f32.mxu0 0.0
        %1788 = vmatmul.mubr.f32.gmra.mrb[0].mxu0 %v1576
        %v1789 = vpop.f32.mrb[0].mxu0
        %v1790 = vadd.f32 %v1494, %v1789
        %v1791 = vpop.f32.mrb[0].mxu0
        %1792 = vmatprep.mubr.f32.mxu0 0.0
        %1793 = vmatmul.mubr.f32.gmra.mrb[0].mxu0 %v1579
        %v1794 = vpop.f32.mrb[0].mxu0
        %v1795 = vadd.f32 %v1494, %v1794
        %v1796 = vpop.f32.mrb[0].mxu0
        %1797 = vmatprep.mubr.f32.mxu0 0.0
        %1798 = vmatmul.mubr.f32.gmra.mrb[0].mxu0 %v1582
        %v1799 = vpop.f32.mrb[0].mxu0
        %v1800 = vadd.f32 %v1494, %v1799
        %v1801 = vpop.f32.mrb[0].mxu0
        %1802 = vmatprep.mubr.f32.mxu0 0.0
        %1803 = vmatmul.mubr.f32.gmra.mrb[0].mxu0 %v1585
        %v1804 = vpop.f32.mrb[0].mxu0
        %v1805 = vadd.f32 %v1494, %v1804
        %v1806 = vpop.f32.mrb[0].mxu0
        %1807 = vmatprep.mubr.f32.mxu0 0.0
        %1808 = vmatmul.mubr.f32.gmra.mrb[0].mxu0 %v1588
        %v1809 = vpop.f32.mrb[0].mxu0
        %v1810 = vadd.f32 %v1494, %v1809
        %v1811 = vpop.f32.mrb[0].mxu0
        %1812 = vmatprep.mubr.f32.mxu0 0.0
        %1813 = vmatmul.mubr.f32.gmra.mrb[0].mxu0 %v1591
        %v1814 = vpop.f32.mrb[0].mxu0
        %v1815 = vadd.f32 %v1494, %v1814
        %v1816 = vpop.f32.mrb[0].mxu0
        %1817 = vdwg.mxu0
        %1818 = vxpose.xlu0.b32.start [1/16] %v1660, 128
        %1819 = vxpose.xlu0.b32.cont [2/16] %v1665, 128
        %1820 = vxpose.xlu0.b32.cont [3/16] %v1670, 128
        %1821 = vxpose.xlu0.b32.cont [4/16] %v1675, 128
        %1822 = vxpose.xlu0.b32.cont [5/16] 0.0, 128
        %1823 = vxpose.xlu0.b32.cont [6/16] 0.0, 128
        %1824 = vxpose.xlu0.b32.cont [7/16] 0.0, 128
        %1825 = vxpose.xlu0.b32.cont [8/16] 0.0, 128
        %1826 = vxpose.xlu0.b32.cont [9/16] 0.0, 128
        %1827 = vxpose.xlu0.b32.cont [10/16] 0.0, 128
        %1828 = vxpose.xlu0.b32.cont [11/16] 0.0, 128
        %1829 = vxpose.xlu0.b32.cont [12/16] 0.0, 128
        %1830 = vxpose.xlu0.b32.cont [13/16] 0.0, 128
        %1831 = vxpose.xlu0.b32.cont [14/16] 0.0, 128
        %1832 = vxpose.xlu0.b32.cont [15/16] 0.0, 128
        %1833 = vxpose.xlu0.b32.end [16/16] 0.0, 128
        %v1834 = vpop.trf.xlu0
        %v1835 = vpop.trf.xlu0
        %v1836 = vpop.trf.xlu0
        %v1837 = vpop.trf.xlu0
        %v1838 = vpop.trf.xlu0
        %v1839 = vpop.trf.xlu0
        %v1840 = vpop.trf.xlu0
        %v1841 = vpop.trf.xlu0
        %v1842 = vpop.trf.xlu0
        %v1843 = vpop.trf.xlu0
        %v1844 = vpop.trf.xlu0
        %v1845 = vpop.trf.xlu0
        %v1846 = vpop.trf.xlu0
        %v1847 = vpop.trf.xlu0
        %v1848 = vpop.trf.xlu0
        %v1849 = vpop.trf.xlu0
        %1850 = vxpose.xlu0.b32.start [1/16] %v1680, 128
        %1851 = vxpose.xlu0.b32.cont [2/16] %v1685, 128
        %1852 = vxpose.xlu0.b32.cont [3/16] %v1690, 128
        %1853 = vxpose.xlu0.b32.cont [4/16] %v1695, 128
        %1854 = vxpose.xlu0.b32.cont [5/16] 0.0, 128
        %1855 = vxpose.xlu0.b32.cont [6/16] 0.0, 128
        %1856 = vxpose.xlu0.b32.cont [7/16] 0.0, 128
        %1857 = vxpose.xlu0.b32.cont [8/16] 0.0, 128
        %1858 = vxpose.xlu0.b32.cont [9/16] 0.0, 128
        %1859 = vxpose.xlu0.b32.cont [10/16] 0.0, 128
        %1860 = vxpose.xlu0.b32.cont [11/16] 0.0, 128
        %1861 = vxpose.xlu0.b32.cont [12/16] 0.0, 128
        %1862 = vxpose.xlu0.b32.cont [13/16] 0.0, 128
        %1863 = vxpose.xlu0.b32.cont [14/16] 0.0, 128
        %1864 = vxpose.xlu0.b32.cont [15/16] 0.0, 128
        %1865 = vxpose.xlu0.b32.end [16/16] 0.0, 128
        %v1866 = vpop.trf.xlu0
        %v1867 = vpop.trf.xlu0
        %v1868 = vpop.trf.xlu0
        %v1869 = vpop.trf.xlu0
        %v1870 = vpop.trf.xlu0
        %v1871 = vpop.trf.xlu0
        %v1872 = vpop.trf.xlu0
        %v1873 = vpop.trf.xlu0
        %v1874 = vpop.trf.xlu0
        %v1875 = vpop.trf.xlu0
        %v1876 = vpop.trf.xlu0
        %v1877 = vpop.trf.xlu0
        %v1878 = vpop.trf.xlu0
        %v1879 = vpop.trf.xlu0
        %v1880 = vpop.trf.xlu0
        %v1881 = vpop.trf.xlu0
        %1882 = vxpose.xlu0.b32.start [1/16] %v1700, 128
        %1883 = vxpose.xlu0.b32.cont [2/16] %v1705, 128
        %1884 = vxpose.xlu0.b32.cont [3/16] %v1710, 128
        %1885 = vxpose.xlu0.b32.cont [4/16] %v1715, 128
        %1886 = vxpose.xlu0.b32.cont [5/16] 0.0, 128
        %1887 = vxpose.xlu0.b32.cont [6/16] 0.0, 128
        %1888 = vxpose.xlu0.b32.cont [7/16] 0.0, 128
        %1889 = vxpose.xlu0.b32.cont [8/16] 0.0, 128
        %1890 = vxpose.xlu0.b32.cont [9/16] 0.0, 128
        %1891 = vxpose.xlu0.b32.cont [10/16] 0.0, 128
        %1892 = vxpose.xlu0.b32.cont [11/16] 0.0, 128
        %1893 = vxpose.xlu0.b32.cont [12/16] 0.0, 128
        %1894 = vxpose.xlu0.b32.cont [13/16] 0.0, 128
        %1895 = vxpose.xlu0.b32.cont [14/16] 0.0, 128
        %1896 = vxpose.xlu0.b32.cont [15/16] 0.0, 128
        %1897 = vxpose.xlu0.b32.end [16/16] 0.0, 128
        %v1898 = vpop.trf.xlu0
        %v1899 = vpop.trf.xlu0
        %v1900 = vpop.trf.xlu0
        %v1901 = vpop.trf.xlu0
        %v1902 = vpop.trf.xlu0
        %v1903 = vpop.trf.xlu0
        %v1904 = vpop.trf.xlu0
        %v1905 = vpop.trf.xlu0
        %v1906 = vpop.trf.xlu0
        %v1907 = vpop.trf.xlu0
        %v1908 = vpop.trf.xlu0
        %v1909 = vpop.trf.xlu0
        %v1910 = vpop.trf.xlu0
        %v1911 = vpop.trf.xlu0
        %v1912 = vpop.trf.xlu0
        %v1913 = vpop.trf.xlu0
        %1914 = vxpose.xlu0.b32.start [1/16] %v1720, 128
        %1915 = vxpose.xlu0.b32.cont [2/16] %v1725, 128
        %1916 = vxpose.xlu0.b32.cont [3/16] %v1730, 128
        %1917 = vxpose.xlu0.b32.cont [4/16] %v1735, 128
        %1918 = vxpose.xlu0.b32.cont [5/16] 0.0, 128
        %1919 = vxpose.xlu0.b32.cont [6/16] 0.0, 128
        %1920 = vxpose.xlu0.b32.cont [7/16] 0.0, 128
        %1921 = vxpose.xlu0.b32.cont [8/16] 0.0, 128
        %1922 = vxpose.xlu0.b32.cont [9/16] 0.0, 128
        %1923 = vxpose.xlu0.b32.cont [10/16] 0.0, 128
        %1924 = vxpose.xlu0.b32.cont [11/16] 0.0, 128
        %1925 = vxpose.xlu0.b32.cont [12/16] 0.0, 128
        %1926 = vxpose.xlu0.b32.cont [13/16] 0.0, 128
        %1927 = vxpose.xlu0.b32.cont [14/16] 0.0, 128
        %1928 = vxpose.xlu0.b32.cont [15/16] 0.0, 128
        %1929 = vxpose.xlu0.b32.end [16/16] 0.0, 128
        %v1930 = vpop.trf.xlu0
        %v1931 = vpop.trf.xlu0
        %v1932 = vpop.trf.xlu0
        %v1933 = vpop.trf.xlu0
        %v1934 = vpop.trf.xlu0
        %v1935 = vpop.trf.xlu0
        %v1936 = vpop.trf.xlu0
        %v1937 = vpop.trf.xlu0
        %v1938 = vpop.trf.xlu0
        %v1939 = vpop.trf.xlu0
        %v1940 = vpop.trf.xlu0
        %v1941 = vpop.trf.xlu0
        %v1942 = vpop.trf.xlu0
        %v1943 = vpop.trf.xlu0
        %v1944 = vpop.trf.xlu0
        %v1945 = vpop.trf.xlu0
        %1946 = vxpose.xlu0.b32.start [1/16] %v1740, 128
        %1947 = vxpose.xlu0.b32.cont [2/16] %v1745, 128
        %1948 = vxpose.xlu0.b32.cont [3/16] %v1750, 128
        %1949 = vxpose.xlu0.b32.cont [4/16] %v1755, 128
        %1950 = vxpose.xlu0.b32.cont [5/16] 0.0, 128
        %1951 = vxpose.xlu0.b32.cont [6/16] 0.0, 128
        %1952 = vxpose.xlu0.b32.cont [7/16] 0.0, 128
        %1953 = vxpose.xlu0.b32.cont [8/16] 0.0, 128
        %1954 = vxpose.xlu0.b32.cont [9/16] 0.0, 128
        %1955 = vxpose.xlu0.b32.cont [10/16] 0.0, 128
        %1956 = vxpose.xlu0.b32.cont [11/16] 0.0, 128
        %1957 = vxpose.xlu0.b32.cont [12/16] 0.0, 128
        %1958 = vxpose.xlu0.b32.cont [13/16] 0.0, 128
        %1959 = vxpose.xlu0.b32.cont [14/16] 0.0, 128
        %1960 = vxpose.xlu0.b32.cont [15/16] 0.0, 128
        %1961 = vxpose.xlu0.b32.end [16/16] 0.0, 128
        %v1962 = vpop.trf.xlu0
        %v1963 = vpop.trf.xlu0
        %v1964 = vpop.trf.xlu0
        %v1965 = vpop.trf.xlu0
        %v1966 = vpop.trf.xlu0
        %v1967 = vpop.trf.xlu0
        %v1968 = vpop.trf.xlu0
        %v1969 = vpop.trf.xlu0
        %v1970 = vpop.trf.xlu0
        %v1971 = vpop.trf.xlu0
        %v1972 = vpop.trf.xlu0
        %v1973 = vpop.trf.xlu0
        %v1974 = vpop.trf.xlu0
        %v1975 = vpop.trf.xlu0
        %v1976 = vpop.trf.xlu0
        %v1977 = vpop.trf.xlu0
        %1978 = vxpose.xlu0.b32.start [1/16] %v1760, 128
        %1979 = vxpose.xlu0.b32.cont [2/16] %v1765, 128
        %1980 = vxpose.xlu0.b32.cont [3/16] %v1770, 128
        %1981 = vxpose.xlu0.b32.cont [4/16] %v1775, 128
        %1982 = vxpose.xlu0.b32.cont [5/16] 0.0, 128
        %1983 = vxpose.xlu0.b32.cont [6/16] 0.0, 128
        %1984 = vxpose.xlu0.b32.cont [7/16] 0.0, 128
        %1985 = vxpose.xlu0.b32.cont [8/16] 0.0, 128
        %1986 = vxpose.xlu0.b32.cont [9/16] 0.0, 128
        %1987 = vxpose.xlu0.b32.cont [10/16] 0.0, 128
        %1988 = vxpose.xlu0.b32.cont [11/16] 0.0, 128
        %1989 = vxpose.xlu0.b32.cont [12/16] 0.0, 128
        %1990 = vxpose.xlu0.b32.cont [13/16] 0.0, 128
        %1991 = vxpose.xlu0.b32.cont [14/16] 0.0, 128
        %1992 = vxpose.xlu0.b32.cont [15/16] 0.0, 128
        %1993 = vxpose.xlu0.b32.end [16/16] 0.0, 128
        %v1994 = vpop.trf.xlu0
        %v1995 = vpop.trf.xlu0
        %v1996 = vpop.trf.xlu0
        %v1997 = vpop.trf.xlu0
        %v1998 = vpop.trf.xlu0
        %v1999 = vpop.trf.xlu0
        %v2000 = vpop.trf.xlu0
        %v2001 = vpop.trf.xlu0
        %v2002 = vpop.trf.xlu0
        %v2003 = vpop.trf.xlu0
        %v2004 = vpop.trf.xlu0
        %v2005 = vpop.trf.xlu0
        %v2006 = vpop.trf.xlu0
        %v2007 = vpop.trf.xlu0
        %v2008 = vpop.trf.xlu0
        %v2009 = vpop.trf.xlu0
        %2010 = vxpose.xlu0.b32.start [1/16] %v1780, 128
        %2011 = vxpose.xlu0.b32.cont [2/16] %v1785, 128
        %2012 = vxpose.xlu0.b32.cont [3/16] %v1790, 128
        %2013 = vxpose.xlu0.b32.cont [4/16] %v1795, 128
        %2014 = vxpose.xlu0.b32.cont [5/16] 0.0, 128
        %2015 = vxpose.xlu0.b32.cont [6/16] 0.0, 128
        %2016 = vxpose.xlu0.b32.cont [7/16] 0.0, 128
        %2017 = vxpose.xlu0.b32.cont [8/16] 0.0, 128
        %2018 = vxpose.xlu0.b32.cont [9/16] 0.0, 128
        %2019 = vxpose.xlu0.b32.cont [10/16] 0.0, 128
        %2020 = vxpose.xlu0.b32.cont [11/16] 0.0, 128
        %2021 = vxpose.xlu0.b32.cont [12/16] 0.0, 128
        %2022 = vxpose.xlu0.b32.cont [13/16] 0.0, 128
        %2023 = vxpose.xlu0.b32.cont [14/16] 0.0, 128
        %2024 = vxpose.xlu0.b32.cont [15/16] 0.0, 128
        %2025 = vxpose.xlu0.b32.end [16/16] 0.0, 128
        %v2026 = vpop.trf.xlu0
        %v2027 = vpop.trf.xlu0
        %v2028 = vpop.trf.xlu0
        %v2029 = vpop.trf.xlu0
        %v2030 = vpop.trf.xlu0
        %v2031 = vpop.trf.xlu0
        %v2032 = vpop.trf.xlu0
        %v2033 = vpop.trf.xlu0
        %v2034 = vpop.trf.xlu0
        %v2035 = vpop.trf.xlu0
        %v2036 = vpop.trf.xlu0
        %v2037 = vpop.trf.xlu0
        %v2038 = vpop.trf.xlu0
        %v2039 = vpop.trf.xlu0
        %v2040 = vpop.trf.xlu0
        %v2041 = vpop.trf.xlu0
        %2042 = vxpose.xlu0.b32.start [1/16] %v1800, 128
        %2043 = vxpose.xlu0.b32.cont [2/16] %v1805, 128
        %2044 = vxpose.xlu0.b32.cont [3/16] %v1810, 128
        %2045 = vxpose.xlu0.b32.cont [4/16] %v1815, 128
        %2046 = vxpose.xlu0.b32.cont [5/16] 0.0, 128
        %2047 = vxpose.xlu0.b32.cont [6/16] 0.0, 128
        %2048 = vxpose.xlu0.b32.cont [7/16] 0.0, 128
        %2049 = vxpose.xlu0.b32.cont [8/16] 0.0, 128
        %2050 = vxpose.xlu0.b32.cont [9/16] 0.0, 128
        %2051 = vxpose.xlu0.b32.cont [10/16] 0.0, 128
        %2052 = vxpose.xlu0.b32.cont [11/16] 0.0, 128
        %2053 = vxpose.xlu0.b32.cont [12/16] 0.0, 128
        %2054 = vxpose.xlu0.b32.cont [13/16] 0.0, 128
        %2055 = vxpose.xlu0.b32.cont [14/16] 0.0, 128
        %2056 = vxpose.xlu0.b32.cont [15/16] 0.0, 128
        %2057 = vxpose.xlu0.b32.end [16/16] 0.0, 128
        %v2058 = vpop.trf.xlu0
        %v2059 = vpop.trf.xlu0
        %v2060 = vpop.trf.xlu0
        %v2061 = vpop.trf.xlu0
        %v2062 = vpop.trf.xlu0
        %v2063 = vpop.trf.xlu0
        %v2064 = vpop.trf.xlu0
        %v2065 = vpop.trf.xlu0
        %v2066 = vpop.trf.xlu0
        %v2067 = vpop.trf.xlu0
        %v2068 = vpop.trf.xlu0
        %v2069 = vpop.trf.xlu0
        %v2070 = vpop.trf.xlu0
        %v2071 = vpop.trf.xlu0
        %v2072 = vpop.trf.xlu0
        %v2073 = vpop.trf.xlu0
        %v2074 = vadd.f32 %v462, %v1834
        %v2075 = vadd.f32 %v463, %v1835
        %v2076 = vadd.f32 %v464, %v1866
        %v2077 = vadd.f32 %v465, %v1867
        %v2078 = vadd.f32 %v466, %v1898
        %v2079 = vadd.f32 %v467, %v1899
        %v2080 = vadd.f32 %v468, %v1930
        %v2081 = vadd.f32 %v469, %v1931
        %v2082 = vadd.f32 %v470, %v1962
        %v2083 = vadd.f32 %v471, %v1963
        %v2084 = vadd.f32 %v472, %v1994
        %v2085 = vadd.f32 %v473, %v1995
        %v2086 = vadd.f32 %v474, %v2026
        %v2087 = vadd.f32 %v475, %v2027
        %v2088 = vadd.f32 %v476, %v2058
        %v2089 = vadd.f32 %v477, %v2059
        %v2090 = vld [vmem:[%s3] sm:$0x1]
        %v2091 = vld [vmem:[%s4] sm:$0x1]
        %v2092 = vsel %vm480, %v2074, 0.0
        %2093 = vadd.xlane.f32.xlu0 %v2092
        %v2094 = vpop.xlane.xlu0 %2093
        %v2095 = vsel %vm480, %v2075, 0.0
        %2096 = vadd.xlane.f32.xlu0 %v2095
        %v2097 = vpop.xlane.xlu0 %2096
        %v2098 = vsel %vm480, %v2076, 0.0
        %2099 = vadd.xlane.f32.xlu0 %v2098
        %v2100 = vpop.xlane.xlu0 %2099
        %v2101 = vsel %vm480, %v2077, 0.0
        %2102 = vadd.xlane.f32.xlu0 %v2101
        %v2103 = vpop.xlane.xlu0 %2102
        %v2104 = vsel %vm480, %v2078, 0.0
        %2105 = vadd.xlane.f32.xlu0 %v2104
        %v2106 = vpop.xlane.xlu0 %2105
        %v2107 = vsel %vm480, %v2079, 0.0
        %2108 = vadd.xlane.f32.xlu0 %v2107
        %v2109 = vpop.xlane.xlu0 %2108
        %v2110 = vsel %vm480, %v2080, 0.0
        %2111 = vadd.xlane.f32.xlu0 %v2110
        %v2112 = vpop.xlane.xlu0 %2111
        %v2113 = vsel %vm480, %v2081, 0.0
        %2114 = vadd.xlane.f32.xlu0 %v2113
        %v2115 = vpop.xlane.xlu0 %2114
        %v2116 = vsel %vm480, %v2082, 0.0
        %2117 = vadd.xlane.f32.xlu0 %v2116
        %v2118 = vpop.xlane.xlu0 %2117
        %v2119 = vsel %vm480, %v2083, 0.0
        %2120 = vadd.xlane.f32.xlu0 %v2119
        %v2121 = vpop.xlane.xlu0 %2120
        %v2122 = vsel %vm480, %v2084, 0.0
        %2123 = vadd.xlane.f32.xlu0 %v2122
        %v2124 = vpop.xlane.xlu0 %2123
        %v2125 = vsel %vm480, %v2085, 0.0
        %2126 = vadd.xlane.f32.xlu0 %v2125
        %v2127 = vpop.xlane.xlu0 %2126
        %v2128 = vsel %vm480, %v2086, 0.0
        %2129 = vadd.xlane.f32.xlu0 %v2128
        %v2130 = vpop.xlane.xlu0 %2129
        %v2131 = vsel %vm480, %v2087, 0.0
        %2132 = vadd.xlane.f32.xlu0 %v2131
        %v2133 = vpop.xlane.xlu0 %2132
        %v2134 = vsel %vm480, %v2088, 0.0
        %2135 = vadd.xlane.f32.xlu0 %v2134
        %v2136 = vpop.xlane.xlu0 %2135
        %v2137 = vsel %vm480, %v2089, 0.0
        %2138 = vadd.xlane.f32.xlu0 %v2137
        %v2139 = vpop.xlane.xlu0 %2138
        %v2140 = vmul.f32 %v2094, %v529
        %v2141 = vmul.f32 %v2097, %v529
        %v2142 = vmul.f32 %v2100, %v529
        %v2143 = vmul.f32 %v2103, %v529
        %v2144 = vmul.f32 %v2106, %v529
        %v2145 = vmul.f32 %v2109, %v529
        %v2146 = vmul.f32 %v2112, %v529
        %v2147 = vmul.f32 %v2115, %v529
        %v2148 = vmul.f32 %v2118, %v529
        %v2149 = vmul.f32 %v2121, %v529
        %v2150 = vmul.f32 %v2124, %v529
        %v2151 = vmul.f32 %v2127, %v529
        %v2152 = vmul.f32 %v2130, %v529
        %v2153 = vmul.f32 %v2133, %v529
        %v2154 = vmul.f32 %v2136, %v529
        %v2155 = vmul.f32 %v2139, %v529
        %v2156 = vsub.f32 %v2074, %v2140
        %v2157 = vsub.f32 %v2075, %v2141
        %v2158 = vsub.f32 %v2076, %v2142
        %v2159 = vsub.f32 %v2077, %v2143
        %v2160 = vsub.f32 %v2078, %v2144
        %v2161 = vsub.f32 %v2079, %v2145
        %v2162 = vsub.f32 %v2080, %v2146
        %v2163 = vsub.f32 %v2081, %v2147
        %v2164 = vsub.f32 %v2082, %v2148
        %v2165 = vsub.f32 %v2083, %v2149
        %v2166 = vsub.f32 %v2084, %v2150
        %v2167 = vsub.f32 %v2085, %v2151
        %v2168 = vsub.f32 %v2086, %v2152
        %v2169 = vsub.f32 %v2087, %v2153
        %v2170 = vsub.f32 %v2088, %v2154
        %v2171 = vsub.f32 %v2089, %v2155
        %v2172 = vmul.f32 %v2156, %v2156
        %v2173 = vmul.f32 %v2157, %v2157
        %v2174 = vmul.f32 %v2158, %v2158
        %v2175 = vmul.f32 %v2159, %v2159
        %v2176 = vmul.f32 %v2160, %v2160
        %v2177 = vmul.f32 %v2161, %v2161
        %v2178 = vmul.f32 %v2162, %v2162
        %v2179 = vmul.f32 %v2163, %v2163
        %v2180 = vmul.f32 %v2164, %v2164
        %v2181 = vmul.f32 %v2165, %v2165
        %v2182 = vmul.f32 %v2166, %v2166
        %v2183 = vmul.f32 %v2167, %v2167
        %v2184 = vmul.f32 %v2168, %v2168
        %v2185 = vmul.f32 %v2169, %v2169
        %v2186 = vmul.f32 %v2170, %v2170
        %v2187 = vmul.f32 %v2171, %v2171
        %v2188 = vsel %vm480, %v2172, 0.0
        %2189 = vadd.xlane.f32.xlu0 %v2188
        %v2190 = vpop.xlane.xlu0 %2189
        %v2191 = vsel %vm480, %v2173, 0.0
        %2192 = vadd.xlane.f32.xlu0 %v2191
        %v2193 = vpop.xlane.xlu0 %2192
        %v2194 = vsel %vm480, %v2174, 0.0
        %2195 = vadd.xlane.f32.xlu0 %v2194
        %v2196 = vpop.xlane.xlu0 %2195
        %v2197 = vsel %vm480, %v2175, 0.0
        %2198 = vadd.xlane.f32.xlu0 %v2197
        %v2199 = vpop.xlane.xlu0 %2198
        %v2200 = vsel %vm480, %v2176, 0.0
        %2201 = vadd.xlane.f32.xlu0 %v2200
        %v2202 = vpop.xlane.xlu0 %2201
        %v2203 = vsel %vm480, %v2177, 0.0
        %2204 = vadd.xlane.f32.xlu0 %v2203
        %v2205 = vpop.xlane.xlu0 %2204
        %v2206 = vsel %vm480, %v2178, 0.0
        %2207 = vadd.xlane.f32.xlu0 %v2206
        %v2208 = vpop.xlane.xlu0 %2207
        %v2209 = vsel %vm480, %v2179, 0.0
        %2210 = vadd.xlane.f32.xlu0 %v2209
        %v2211 = vpop.xlane.xlu0 %2210
        %v2212 = vsel %vm480, %v2180, 0.0
        %2213 = vadd.xlane.f32.xlu0 %v2212
        %v2214 = vpop.xlane.xlu0 %2213
        %v2215 = vsel %vm480, %v2181, 0.0
        %2216 = vadd.xlane.f32.xlu0 %v2215
        %v2217 = vpop.xlane.xlu0 %2216
        %v2218 = vsel %vm480, %v2182, 0.0
        %2219 = vadd.xlane.f32.xlu0 %v2218
        %v2220 = vpop.xlane.xlu0 %2219
        %v2221 = vsel %vm480, %v2183, 0.0
        %2222 = vadd.xlane.f32.xlu0 %v2221
        %v2223 = vpop.xlane.xlu0 %2222
        %v2224 = vsel %vm480, %v2184, 0.0
        %2225 = vadd.xlane.f32.xlu0 %v2224
        %v2226 = vpop.xlane.xlu0 %2225
        %v2227 = vsel %vm480, %v2185, 0.0
        %2228 = vadd.xlane.f32.xlu0 %v2227
        %v2229 = vpop.xlane.xlu0 %2228
        %v2230 = vsel %vm480, %v2186, 0.0
        %2231 = vadd.xlane.f32.xlu0 %v2230
        %v2232 = vpop.xlane.xlu0 %2231
        %v2233 = vsel %vm480, %v2187, 0.0
        %2234 = vadd.xlane.f32.xlu0 %v2233
        %v2235 = vpop.xlane.xlu0 %2234
        %v2236 = vmul.f32 %v2190, %v529
        %v2237 = vmul.f32 %v2193, %v529
        %v2238 = vmul.f32 %v2196, %v529
        %v2239 = vmul.f32 %v2199, %v529
        %v2240 = vmul.f32 %v2202, %v529
        %v2241 = vmul.f32 %v2205, %v529
        %v2242 = vmul.f32 %v2208, %v529
        %v2243 = vmul.f32 %v2211, %v529
        %v2244 = vmul.f32 %v2214, %v529
        %v2245 = vmul.f32 %v2217, %v529
        %v2246 = vmul.f32 %v2220, %v529
        %v2247 = vmul.f32 %v2223, %v529
        %v2248 = vmul.f32 %v2226, %v529
        %v2249 = vmul.f32 %v2229, %v529
        %v2250 = vmul.f32 %v2232, %v529
        %v2251 = vmul.f32 %v2235, %v529
        %v2252 = vadd.f32 %v2236, 1e-06
        %v2253 = vadd.f32 %v2237, 1e-06
        %v2254 = vadd.f32 %v2238, 1e-06
        %v2255 = vadd.f32 %v2239, 1e-06
        %v2256 = vadd.f32 %v2240, 1e-06
        %v2257 = vadd.f32 %v2241, 1e-06
        %v2258 = vadd.f32 %v2242, 1e-06
        %v2259 = vadd.f32 %v2243, 1e-06
        %v2260 = vadd.f32 %v2244, 1e-06
        %v2261 = vadd.f32 %v2245, 1e-06
        %v2262 = vadd.f32 %v2246, 1e-06
        %v2263 = vadd.f32 %v2247, 1e-06
        %v2264 = vadd.f32 %v2248, 1e-06
        %v2265 = vadd.f32 %v2249, 1e-06
        %v2266 = vadd.f32 %v2250, 1e-06
        %v2267 = vadd.f32 %v2251, 1e-06
        %v2268 = vrsqrt.pop %v2252
        %v2269 = vrsqrt.pop %v2253
        %v2270 = vrsqrt.pop %v2254
        %v2271 = vrsqrt.pop %v2255
        %v2272 = vrsqrt.pop %v2256
        %v2273 = vrsqrt.pop %v2257
        %v2274 = vrsqrt.pop %v2258
        %v2275 = vrsqrt.pop %v2259
        %v2276 = vrsqrt.pop %v2260
        %v2277 = vrsqrt.pop %v2261
        %v2278 = vrsqrt.pop %v2262
        %v2279 = vrsqrt.pop %v2263
        %v2280 = vrsqrt.pop %v2264
        %v2281 = vrsqrt.pop %v2265
        %v2282 = vrsqrt.pop %v2266
        %v2283 = vrsqrt.pop %v2267
        %v2284 = vmul.f32 %v2156, %v2268
        %v2285 = vmul.f32 %v2157, %v2269
        %v2286 = vmul.f32 %v2158, %v2270
        %v2287 = vmul.f32 %v2159, %v2271
        %v2288 = vmul.f32 %v2160, %v2272
        %v2289 = vmul.f32 %v2161, %v2273
        %v2290 = vmul.f32 %v2162, %v2274
        %v2291 = vmul.f32 %v2163, %v2275
        %v2292 = vmul.f32 %v2164, %v2276
        %v2293 = vmul.f32 %v2165, %v2277
        %v2294 = vmul.f32 %v2166, %v2278
        %v2295 = vmul.f32 %v2167, %v2279
        %v2296 = vmul.f32 %v2168, %v2280
        %v2297 = vmul.f32 %v2169, %v2281
        %v2298 = vmul.f32 %v2170, %v2282
        %v2299 = vmul.f32 %v2171, %v2283
        %v2301 = vlaneseq
        %v2302 = vshrl.u32 %v2301, 7
        %v2303 = vsub.s32 0, %v2302
        %v2304 = vrot.slane %v2090, %v2303
        %v2306 = vmul.f32 %v2284, %v2304
        %v2307 = vmul.f32 %v2285, %v2304
        %v2308 = vmul.f32 %v2286, %v2304
        %v2309 = vmul.f32 %v2287, %v2304
        %v2310 = vmul.f32 %v2288, %v2304
        %v2311 = vmul.f32 %v2289, %v2304
        %v2312 = vmul.f32 %v2290, %v2304
        %v2313 = vmul.f32 %v2291, %v2304
        %v2314 = vmul.f32 %v2292, %v2304
        %v2315 = vmul.f32 %v2293, %v2304
        %v2316 = vmul.f32 %v2294, %v2304
        %v2317 = vmul.f32 %v2295, %v2304
        %v2318 = vmul.f32 %v2296, %v2304
        %v2319 = vmul.f32 %v2297, %v2304
        %v2320 = vmul.f32 %v2298, %v2304
        %v2321 = vmul.f32 %v2299, %v2304
        %v2323 = vlaneseq
        %v2324 = vshrl.u32 %v2323, 7
        %v2325 = vsub.s32 0, %v2324
        %v2326 = vrot.slane %v2091, %v2325
        %v2328 = vadd.f32 %v2306, %v2326
        %v2329 = vadd.f32 %v2307, %v2326
        %v2330 = vadd.f32 %v2308, %v2326
        %v2331 = vadd.f32 %v2309, %v2326
        %v2332 = vadd.f32 %v2310, %v2326
        %v2333 = vadd.f32 %v2311, %v2326
        %v2334 = vadd.f32 %v2312, %v2326
        %v2335 = vadd.f32 %v2313, %v2326
        %v2336 = vadd.f32 %v2314, %v2326
        %v2337 = vadd.f32 %v2315, %v2326
        %v2338 = vadd.f32 %v2316, %v2326
        %v2339 = vadd.f32 %v2317, %v2326
        %v2340 = vadd.f32 %v2318, %v2326
        %v2341 = vadd.f32 %v2319, %v2326
        %v2342 = vadd.f32 %v2320, %v2326
        %v2343 = vadd.f32 %v2321, %v2326
        %v2344 = vld [vmem:[%s9] sm:$0xff]
        %v2345 = vld [vmem:[%s9 + $0x8] sm:$0xff]
        %v2346 = vld [vmem:[%s9 + $0x10] sm:$0xff]
        %v2347 = vld [vmem:[%s9 + $0x18] sm:$0xff]
        %v2348 = vld [vmem:[%s10] sm:$0x1]
        %v2350 = vlaneseq
        %v2351 = vshrl.u32 %v2350, 7
        %v2352 = vsub.s32 0, %v2351
        %v2353 = vrot.slane %v2348, %v2352
        %v2356 = vsel %vm480, %v2328, 0
        %v2359 = vsel %vm480, %v2329, 0
        %v2362 = vsel %vm480, %v2330, 0
        %v2365 = vsel %vm480, %v2331, 0
        %v2368 = vsel %vm480, %v2332, 0
        %v2371 = vsel %vm480, %v2333, 0
        %v2374 = vsel %vm480, %v2334, 0
        %v2377 = vsel %vm480, %v2335, 0
        %v2380 = vsel %vm480, %v2336, 0
        %v2383 = vsel %vm480, %v2337, 0
        %v2386 = vsel %vm480, %v2338, 0
        %v2389 = vsel %vm480, %v2339, 0
        %v2392 = vsel %vm480, %v2340, 0
        %v2395 = vsel %vm480, %v2341, 0
        %v2398 = vsel %vm480, %v2342, 0
        %v2401 = vsel %vm480, %v2343, 0
        %2403 = vmatprep.subr.mxu0 0.0
        %2404 = vmatpush1.msra.mxu0 %v2344
        %2405 = vmatprep.subr.mxu0 0.0
        %2406 = vmatpush1.msra.mxu0 %v2345
        %2407 = vmatprep.subr.mxu0 0.0
        %2408 = vmatpush1.msra.mxu0 %v2346
        %2409 = vmatprep.subr.mxu0 0.0
        %2410 = vmatpush1.msra.mxu0 %v2347
        %2411 = vmatprep.subr.mxu0 0.0
        %2412 = vmatpush1.msra.mxu0 0.0
        %2413 = vmatprep.subr.mxu0 0.0
        %2414 = vmatpush1.msra.mxu0 0.0
        %2415 = vmatprep.subr.mxu0 0.0
        %2416 = vmatpush1.msra.mxu0 0.0
        %2417 = vmatprep.subr.mxu0 0.0
        %2418 = vmatpush1.msra.mxu0 0.0
        %2419 = vmatprep.subr.mxu0 0.0
        %2420 = vmatpush1.msra.mxu0 0.0
        %2421 = vmatprep.subr.mxu0 0.0
        %2422 = vmatpush1.msra.mxu0 0.0
        %2423 = vmatprep.subr.mxu0 0.0
        %2424 = vmatpush1.msra.mxu0 0.0
        %2425 = vmatprep.subr.mxu0 0.0
        %2426 = vmatpush1.msra.mxu0 0.0
        %2427 = vmatprep.subr.mxu0 0.0
        %2428 = vmatpush1.msra.mxu0 0.0
        %2429 = vmatprep.subr.mxu0 0.0
        %2430 = vmatpush1.msra.mxu0 0.0
        %2431 = vmatprep.subr.mxu0 0.0
        %2432 = vmatpush1.msra.mxu0 0.0
        %2433 = vmatprep.subr.mxu0 0.0
        %2434 = vmatpush1.msra.mxu0 0.0
        %2435 = vmatprep.subr.mxu0 0.0
        %2436 = vmatpush1.msra.mxu0 0.0
        %2437 = vmatprep.subr.mxu0 0.0
        %2438 = vmatpush1.msra.mxu0 0.0
        %2439 = vmatprep.subr.mxu0 0.0
        %2440 = vmatpush1.msra.mxu0 0.0
        %2441 = vmatprep.subr.mxu0 0.0
        %2442 = vmatpush1.msra.mxu0 0.0
        %2443 = vmatprep.subr.mxu0 0.0
        %2444 = vmatpush1.msra.mxu0 0.0
        %2445 = vmatprep.subr.mxu0 0.0
        %2446 = vmatpush1.msra.mxu0 0.0
        %2447 = vmatprep.subr.mxu0 0.0
        %2448 = vmatpush1.msra.mxu0 0.0
        %2449 = vmatprep.subr.mxu0 0.0
        %2450 = vmatpush1.msra.mxu0 0.0
        %2451 = vmatprep.subr.mxu0 0.0
        %2452 = vmatpush1.msra.mxu0 0.0
        %2453 = vmatprep.subr.mxu0 0.0
        %2454 = vmatpush1.msra.mxu0 0.0
        %2455 = vmatprep.subr.mxu0 0.0
        %2456 = vmatpush1.msra.mxu0 0.0
        %2457 = vmatprep.subr.mxu0 0.0
        %2458 = vmatpush1.msra.mxu0 0.0
        %2459 = vmatprep.subr.mxu0 0.0
        %2460 = vmatpush1.msra.mxu0 0.0
        %2461 = vmatprep.subr.mxu0 0.0
        %2462 = vmatpush1.msra.mxu0 0.0
        %2463 = vmatprep.subr.mxu0 0.0
        %2464 = vmatpush1.msra.mxu0 0.0
        %2465 = vmatprep.subr.mxu0 0.0
        %2466 = vmatpush1.msra.mxu0 0.0
        %2467 = vmatprep.mubr.f32.mxu0 0.0
        %2468 = vmatmul.mubr.f32.gmra.mrb[0].mxu0 %v2356
        %v2469 = vpop.f32.mrb[0].mxu0
        %v2470 = vadd.f32 %v2353, %v2469
        %v2471 = vpop.f32.mrb[0].mxu0
        %2472 = vmatprep.mubr.f32.mxu0 0.0
        %2473 = vmatmul.mubr.f32.gmra.mrb[0].mxu0 %v2359
        %v2474 = vpop.f32.mrb[0].mxu0
        %v2475 = vadd.f32 %v2353, %v2474
        %v2476 = vpop.f32.mrb[0].mxu0
        %2477 = vmatprep.mubr.f32.mxu0 0.0
        %2478 = vmatmul.mubr.f32.gmra.mrb[0].mxu0 %v2362
        %v2479 = vpop.f32.mrb[0].mxu0
        %v2480 = vadd.f32 %v2353, %v2479
        %v2481 = vpop.f32.mrb[0].mxu0
        %2482 = vmatprep.mubr.f32.mxu0 0.0
        %2483 = vmatmul.mubr.f32.gmra.mrb[0].mxu0 %v2365
        %v2484 = vpop.f32.mrb[0].mxu0
        %v2485 = vadd.f32 %v2353, %v2484
        %v2486 = vpop.f32.mrb[0].mxu0
        %2487 = vmatprep.mubr.f32.mxu0 0.0
        %2488 = vmatmul.mubr.f32.gmra.mrb[0].mxu0 %v2368
        %v2489 = vpop.f32.mrb[0].mxu0
        %v2490 = vadd.f32 %v2353, %v2489
        %v2491 = vpop.f32.mrb[0].mxu0
        %2492 = vmatprep.mubr.f32.mxu0 0.0
        %2493 = vmatmul.mubr.f32.gmra.mrb[0].mxu0 %v2371
        %v2494 = vpop.f32.mrb[0].mxu0
        %v2495 = vadd.f32 %v2353, %v2494
        %v2496 = vpop.f32.mrb[0].mxu0
        %2497 = vmatprep.mubr.f32.mxu0 0.0
        %2498 = vmatmul.mubr.f32.gmra.mrb[0].mxu0 %v2374
        %v2499 = vpop.f32.mrb[0].mxu0
        %v2500 = vadd.f32 %v2353, %v2499
        %v2501 = vpop.f32.mrb[0].mxu0
        %2502 = vmatprep.mubr.f32.mxu0 0.0
        %2503 = vmatmul.mubr.f32.gmra.mrb[0].mxu0 %v2377
        %v2504 = vpop.f32.mrb[0].mxu0
        %v2505 = vadd.f32 %v2353, %v2504
        %v2506 = vpop.f32.mrb[0].mxu0
        %2507 = vmatprep.mubr.f32.mxu0 0.0
        %2508 = vmatmul.mubr.f32.gmra.mrb[0].mxu0 %v2380
        %v2509 = vpop.f32.mrb[0].mxu0
        %v2510 = vadd.f32 %v2353, %v2509
        %v2511 = vpop.f32.mrb[0].mxu0
        %2512 = vmatprep.mubr.f32.mxu0 0.0
        %2513 = vmatmul.mubr.f32.gmra.mrb[0].mxu0 %v2383
        %v2514 = vpop.f32.mrb[0].mxu0
        %v2515 = vadd.f32 %v2353, %v2514
        %v2516 = vpop.f32.mrb[0].mxu0
        %2517 = vmatprep.mubr.f32.mxu0 0.0
        %2518 = vmatmul.mubr.f32.gmra.mrb[0].mxu0 %v2386
        %v2519 = vpop.f32.mrb[0].mxu0
        %v2520 = vadd.f32 %v2353, %v2519
        %v2521 = vpop.f32.mrb[0].mxu0
        %2522 = vmatprep.mubr.f32.mxu0 0.0
        %2523 = vmatmul.mubr.f32.gmra.mrb[0].mxu0 %v2389
        %v2524 = vpop.f32.mrb[0].mxu0
        %v2525 = vadd.f32 %v2353, %v2524
        %v2526 = vpop.f32.mrb[0].mxu0
        %2527 = vmatprep.mubr.f32.mxu0 0.0
        %2528 = vmatmul.mubr.f32.gmra.mrb[0].mxu0 %v2392
        %v2529 = vpop.f32.mrb[0].mxu0
        %v2530 = vadd.f32 %v2353, %v2529
        %v2531 = vpop.f32.mrb[0].mxu0
        %2532 = vmatprep.mubr.f32.mxu0 0.0
        %2533 = vmatmul.mubr.f32.gmra.mrb[0].mxu0 %v2395
        %v2534 = vpop.f32.mrb[0].mxu0
        %v2535 = vadd.f32 %v2353, %v2534
        %v2536 = vpop.f32.mrb[0].mxu0
        %2537 = vmatprep.mubr.f32.mxu0 0.0
        %2538 = vmatmul.mubr.f32.gmra.mrb[0].mxu0 %v2398
        %v2539 = vpop.f32.mrb[0].mxu0
        %v2540 = vadd.f32 %v2353, %v2539
        %v2541 = vpop.f32.mrb[0].mxu0
        %2542 = vmatprep.mubr.f32.mxu0 0.0
        %2543 = vmatmul.mubr.f32.gmra.mrb[0].mxu0 %v2401
        %v2544 = vpop.f32.mrb[0].mxu0
        %v2545 = vadd.f32 %v2353, %v2544
        %v2546 = vpop.f32.mrb[0].mxu0
        %2547 = vdwg.mxu0
        %v2548 = vmul.f32 %v2470, 0.5
        %v2549 = vmul.f32 %v2475, 0.5
        %v2550 = vmul.f32 %v2480, 0.5
        %v2551 = vmul.f32 %v2485, 0.5
        %v2552 = vmul.f32 %v2490, 0.5
        %v2553 = vmul.f32 %v2495, 0.5
        %v2554 = vmul.f32 %v2500, 0.5
        %v2555 = vmul.f32 %v2505, 0.5
        %v2556 = vmul.f32 %v2510, 0.5
        %v2557 = vmul.f32 %v2515, 0.5
        %v2558 = vmul.f32 %v2520, 0.5
        %v2559 = vmul.f32 %v2525, 0.5
        %v2560 = vmul.f32 %v2530, 0.5
        %v2561 = vmul.f32 %v2535, 0.5
        %v2562 = vmul.f32 %v2540, 0.5
        %v2563 = vmul.f32 %v2545, 0.5
        %v2564 = vmul.f32 %v2470, 0.70710677
        %v2565 = vmul.f32 %v2475, 0.70710677
        %v2566 = vmul.f32 %v2480, 0.70710677
        %v2567 = vmul.f32 %v2485, 0.70710677
        %v2568 = vmul.f32 %v2490, 0.70710677
        %v2569 = vmul.f32 %v2495, 0.70710677
        %v2570 = vmul.f32 %v2500, 0.70710677
        %v2571 = vmul.f32 %v2505, 0.70710677
        %v2572 = vmul.f32 %v2510, 0.70710677
        %v2573 = vmul.f32 %v2515, 0.70710677
        %v2574 = vmul.f32 %v2520, 0.70710677
        %v2575 = vmul.f32 %v2525, 0.70710677
        %v2576 = vmul.f32 %v2530, 0.70710677
        %v2577 = vmul.f32 %v2535, 0.70710677
        %v2578 = vmul.f32 %v2540, 0.70710677
        %v2579 = vmul.f32 %v2545, 0.70710677
        %v2580 = verf.f32.pop %v2564
        %v2581 = verf.f32.pop %v2565
        %v2582 = verf.f32.pop %v2566
        %v2583 = verf.f32.pop %v2567
        %v2584 = verf.f32.pop %v2568
        %v2585 = verf.f32.pop %v2569
        %v2586 = verf.f32.pop %v2570
        %v2587 = verf.f32.pop %v2571
        %v2588 = verf.f32.pop %v2572
        %v2589 = verf.f32.pop %v2573
        %v2590 = verf.f32.pop %v2574
        %v2591 = verf.f32.pop %v2575
        %v2592 = verf.f32.pop %v2576
        %v2593 = verf.f32.pop %v2577
        %v2594 = verf.f32.pop %v2578
        %v2595 = verf.f32.pop %v2579
        %v2596 = vadd.f32 %v2580, 1.0
        %v2597 = vadd.f32 %v2581, 1.0
        %v2598 = vadd.f32 %v2582, 1.0
        %v2599 = vadd.f32 %v2583, 1.0
        %v2600 = vadd.f32 %v2584, 1.0
        %v2601 = vadd.f32 %v2585, 1.0
        %v2602 = vadd.f32 %v2586, 1.0
        %v2603 = vadd.f32 %v2587, 1.0
        %v2604 = vadd.f32 %v2588, 1.0
        %v2605 = vadd.f32 %v2589, 1.0
        %v2606 = vadd.f32 %v2590, 1.0
        %v2607 = vadd.f32 %v2591, 1.0
        %v2608 = vadd.f32 %v2592, 1.0
        %v2609 = vadd.f32 %v2593, 1.0
        %v2610 = vadd.f32 %v2594, 1.0
        %v2611 = vadd.f32 %v2595, 1.0
        %v2612 = vmul.f32 %v2548, %v2596
        %v2613 = vmul.f32 %v2549, %v2597
        %v2614 = vmul.f32 %v2550, %v2598
        %v2615 = vmul.f32 %v2551, %v2599
        %v2616 = vmul.f32 %v2552, %v2600
        %v2617 = vmul.f32 %v2553, %v2601
        %v2618 = vmul.f32 %v2554, %v2602
        %v2619 = vmul.f32 %v2555, %v2603
        %v2620 = vmul.f32 %v2556, %v2604
        %v2621 = vmul.f32 %v2557, %v2605
        %v2622 = vmul.f32 %v2558, %v2606
        %v2623 = vmul.f32 %v2559, %v2607
        %v2624 = vmul.f32 %v2560, %v2608
        %v2625 = vmul.f32 %v2561, %v2609
        %v2626 = vmul.f32 %v2562, %v2610
        %v2627 = vmul.f32 %v2563, %v2611
        %v2628 = vld [vmem:[%s11] sm:$0xff]
        %v2629 = vld [vmem:[%s11 + $0x8] sm:$0xff]
        %v2630 = vld [vmem:[%s11 + $0x10] sm:$0xff]
        %v2631 = vld [vmem:[%s11 + $0x18] sm:$0xff]
        %v2632 = vld [vmem:[%s11 + $0x20] sm:$0xff]
        %v2633 = vld [vmem:[%s11 + $0x28] sm:$0xff]
        %v2634 = vld [vmem:[%s11 + $0x30] sm:$0xff]
        %v2635 = vld [vmem:[%s11 + $0x38] sm:$0xff]
        %v2636 = vld [vmem:[%s11 + $0x40] sm:$0xff]
        %v2637 = vld [vmem:[%s11 + $0x48] sm:$0xff]
        %v2638 = vld [vmem:[%s11 + $0x50] sm:$0xff]
        %v2639 = vld [vmem:[%s11 + $0x58] sm:$0xff]
        %v2640 = vld [vmem:[%s11 + $0x60] sm:$0xff]
        %v2641 = vld [vmem:[%s11 + $0x68] sm:$0xff]
        %v2642 = vld [vmem:[%s11 + $0x70] sm:$0xff]
        %v2643 = vld [vmem:[%s11 + $0x78] sm:$0xff]
        %v2644 = vld [vmem:[%s12] sm:$0x1]
        %v2646 = vlaneseq
        %v2647 = vshrl.u32 %v2646, 7
        %v2648 = vsub.s32 0, %v2647
        %v2649 = vrot.slane %v2644, %v2648
        %2651 = vmatprep.subr.mxu0 0.0
        %2652 = vmatpush1.msra.mxu0 %v2628
        %2653 = vmatprep.subr.mxu0 0.0
        %2654 = vmatpush1.msra.mxu0 %v2629
        %2655 = vmatprep.subr.mxu0 0.0
        %2656 = vmatpush1.msra.mxu0 %v2630
        %2657 = vmatprep.subr.mxu0 0.0
        %2658 = vmatpush1.msra.mxu0 %v2631
        %2659 = vmatprep.subr.mxu0 0.0
        %2660 = vmatpush1.msra.mxu0 %v2632
        %2661 = vmatprep.subr.mxu0 0.0
        %2662 = vmatpush1.msra.mxu0 %v2633
        %2663 = vmatprep.subr.mxu0 0.0
        %2664 = vmatpush1.msra.mxu0 %v2634
        %2665 = vmatprep.subr.mxu0 0.0
        %2666 = vmatpush1.msra.mxu0 %v2635
        %2667 = vmatprep.subr.mxu0 0.0
        %2668 = vmatpush1.msra.mxu0 %v2636
        %2669 = vmatprep.subr.mxu0 0.0
        %2670 = vmatpush1.msra.mxu0 %v2637
        %2671 = vmatprep.subr.mxu0 0.0
        %2672 = vmatpush1.msra.mxu0 %v2638
        %2673 = vmatprep.subr.mxu0 0.0
        %2674 = vmatpush1.msra.mxu0 %v2639
        %2675 = vmatprep.subr.mxu0 0.0
        %2676 = vmatpush1.msra.mxu0 %v2640
        %2677 = vmatprep.subr.mxu0 0.0
        %2678 = vmatpush1.msra.mxu0 %v2641
        %2679 = vmatprep.subr.mxu0 0.0
        %2680 = vmatpush1.msra.mxu0 %v2642
        %2681 = vmatprep.subr.mxu0 0.0
        %2682 = vmatpush1.msra.mxu0 %v2643
        %2683 = vmatprep.subr.mxu0 0.0
        %2684 = vmatpush1.msra.mxu0 0.0
        %2685 = vmatprep.subr.mxu0 0.0
        %2686 = vmatpush1.msra.mxu0 0.0
        %2687 = vmatprep.subr.mxu0 0.0
        %2688 = vmatpush1.msra.mxu0 0.0
        %2689 = vmatprep.subr.mxu0 0.0
        %2690 = vmatpush1.msra.mxu0 0.0
        %2691 = vmatprep.subr.mxu0 0.0
        %2692 = vmatpush1.msra.mxu0 0.0
        %2693 = vmatprep.subr.mxu0 0.0
        %2694 = vmatpush1.msra.mxu0 0.0
        %2695 = vmatprep.subr.mxu0 0.0
        %2696 = vmatpush1.msra.mxu0 0.0
        %2697 = vmatprep.subr.mxu0 0.0
        %2698 = vmatpush1.msra.mxu0 0.0
        %2699 = vmatprep.subr.mxu0 0.0
        %2700 = vmatpush1.msra.mxu0 0.0
        %2701 = vmatprep.subr.mxu0 0.0
        %2702 = vmatpush1.msra.mxu0 0.0
        %2703 = vmatprep.subr.mxu0 0.0
        %2704 = vmatpush1.msra.mxu0 0.0
        %2705 = vmatprep.subr.mxu0 0.0
        %2706 = vmatpush1.msra.mxu0 0.0
        %2707 = vmatprep.subr.mxu0 0.0
        %2708 = vmatpush1.msra.mxu0 0.0
        %2709 = vmatprep.subr.mxu0 0.0
        %2710 = vmatpush1.msra.mxu0 0.0
        %2711 = vmatprep.subr.mxu0 0.0
        %2712 = vmatpush1.msra.mxu0 0.0
        %2713 = vmatprep.subr.mxu0 0.0
        %2714 = vmatpush1.msra.mxu0 0.0
        %2715 = vmatprep.mubr.f32.mxu0 0.0
        %2716 = vmatmul.mubr.f32.gmra.mrb[0].mxu0 %v2612
        %v2717 = vpop.f32.mrb[0].mxu0
        %v2718 = vadd.f32 %v2649, %v2717
        %v2719 = vpop.f32.mrb[0].mxu0
        %2720 = vmatprep.mubr.f32.mxu0 0.0
        %2721 = vmatmul.mubr.f32.gmra.mrb[0].mxu0 %v2613
        %v2722 = vpop.f32.mrb[0].mxu0
        %v2723 = vadd.f32 %v2649, %v2722
        %v2724 = vpop.f32.mrb[0].mxu0
        %2725 = vmatprep.mubr.f32.mxu0 0.0
        %2726 = vmatmul.mubr.f32.gmra.mrb[0].mxu0 %v2614
        %v2727 = vpop.f32.mrb[0].mxu0
        %v2728 = vadd.f32 %v2649, %v2727
        %v2729 = vpop.f32.mrb[0].mxu0
        %2730 = vmatprep.mubr.f32.mxu0 0.0
        %2731 = vmatmul.mubr.f32.gmra.mrb[0].mxu0 %v2615
        %v2732 = vpop.f32.mrb[0].mxu0
        %v2733 = vadd.f32 %v2649, %v2732
        %v2734 = vpop.f32.mrb[0].mxu0
        %2735 = vmatprep.mubr.f32.mxu0 0.0
        %2736 = vmatmul.mubr.f32.gmra.mrb[0].mxu0 %v2616
        %v2737 = vpop.f32.mrb[0].mxu0
        %v2738 = vadd.f32 %v2649, %v2737
        %v2739 = vpop.f32.mrb[0].mxu0
        %2740 = vmatprep.mubr.f32.mxu0 0.0
        %2741 = vmatmul.mubr.f32.gmra.mrb[0].mxu0 %v2617
        %v2742 = vpop.f32.mrb[0].mxu0
        %v2743 = vadd.f32 %v2649, %v2742
        %v2744 = vpop.f32.mrb[0].mxu0
        %2745 = vmatprep.mubr.f32.mxu0 0.0
        %2746 = vmatmul.mubr.f32.gmra.mrb[0].mxu0 %v2618
        %v2747 = vpop.f32.mrb[0].mxu0
        %v2748 = vadd.f32 %v2649, %v2747
        %v2749 = vpop.f32.mrb[0].mxu0
        %2750 = vmatprep.mubr.f32.mxu0 0.0
        %2751 = vmatmul.mubr.f32.gmra.mrb[0].mxu0 %v2619
        %v2752 = vpop.f32.mrb[0].mxu0
        %v2753 = vadd.f32 %v2649, %v2752
        %v2754 = vpop.f32.mrb[0].mxu0
        %2755 = vmatprep.mubr.f32.mxu0 0.0
        %2756 = vmatmul.mubr.f32.gmra.mrb[0].mxu0 %v2620
        %v2757 = vpop.f32.mrb[0].mxu0
        %v2758 = vadd.f32 %v2649, %v2757
        %v2759 = vpop.f32.mrb[0].mxu0
        %2760 = vmatprep.mubr.f32.mxu0 0.0
        %2761 = vmatmul.mubr.f32.gmra.mrb[0].mxu0 %v2621
        %v2762 = vpop.f32.mrb[0].mxu0
        %v2763 = vadd.f32 %v2649, %v2762
        %v2764 = vpop.f32.mrb[0].mxu0
        %2765 = vmatprep.mubr.f32.mxu0 0.0
        %2766 = vmatmul.mubr.f32.gmra.mrb[0].mxu0 %v2622
        %v2767 = vpop.f32.mrb[0].mxu0
        %v2768 = vadd.f32 %v2649, %v2767
        %v2769 = vpop.f32.mrb[0].mxu0
        %2770 = vmatprep.mubr.f32.mxu0 0.0
        %2771 = vmatmul.mubr.f32.gmra.mrb[0].mxu0 %v2623
        %v2772 = vpop.f32.mrb[0].mxu0
        %v2773 = vadd.f32 %v2649, %v2772
        %v2774 = vpop.f32.mrb[0].mxu0
        %2775 = vmatprep.mubr.f32.mxu0 0.0
        %2776 = vmatmul.mubr.f32.gmra.mrb[0].mxu0 %v2624
        %v2777 = vpop.f32.mrb[0].mxu0
        %v2778 = vadd.f32 %v2649, %v2777
        %v2779 = vpop.f32.mrb[0].mxu0
        %2780 = vmatprep.mubr.f32.mxu0 0.0
        %2781 = vmatmul.mubr.f32.gmra.mrb[0].mxu0 %v2625
        %v2782 = vpop.f32.mrb[0].mxu0
        %v2783 = vadd.f32 %v2649, %v2782
        %v2784 = vpop.f32.mrb[0].mxu0
        %2785 = vmatprep.mubr.f32.mxu0 0.0
        %2786 = vmatmul.mubr.f32.gmra.mrb[0].mxu0 %v2626
        %v2787 = vpop.f32.mrb[0].mxu0
        %v2788 = vadd.f32 %v2649, %v2787
        %v2789 = vpop.f32.mrb[0].mxu0
        %2790 = vmatprep.mubr.f32.mxu0 0.0
        %2791 = vmatmul.mubr.f32.gmra.mrb[0].mxu0 %v2627
        %v2792 = vpop.f32.mrb[0].mxu0
        %v2793 = vadd.f32 %v2649, %v2792
        %v2794 = vpop.f32.mrb[0].mxu0
        %2795 = vdwg.mxu0
        %v2796 = vadd.f32 %v2074, %v2718
        %v2797 = vadd.f32 %v2075, %v2723
        %v2798 = vadd.f32 %v2076, %v2728
        %v2799 = vadd.f32 %v2077, %v2733
        %v2800 = vadd.f32 %v2078, %v2738
        %v2801 = vadd.f32 %v2079, %v2743
        %v2802 = vadd.f32 %v2080, %v2748
        %v2803 = vadd.f32 %v2081, %v2753
        %v2804 = vadd.f32 %v2082, %v2758
        %v2805 = vadd.f32 %v2083, %v2763
        %v2806 = vadd.f32 %v2084, %v2768
        %v2807 = vadd.f32 %v2085, %v2773
        %v2808 = vadd.f32 %v2086, %v2778
        %v2809 = vadd.f32 %v2087, %v2783
        %v2810 = vadd.f32 %v2088, %v2788
        %v2811 = vadd.f32 %v2089, %v2793
        %2812 = vst.msk [vmem:[%s459] sm:$0xff] %vm480, %v2796
        %2813 = vst.msk [vmem:[%s459 + $0x8] sm:$0xff] %vm480, %v2797
        %2814 = vst.msk [vmem:[%s459 + $0x10] sm:$0xff] %vm480, %v2798
        %2815 = vst.msk [vmem:[%s459 + $0x18] sm:$0xff] %vm480, %v2799
        %2816 = vst.msk [vmem:[%s459 + $0x20] sm:$0xff] %vm480, %v2800
        %2817 = vst.msk [vmem:[%s459 + $0x28] sm:$0xff] %vm480, %v2801
        %2818 = vst.msk [vmem:[%s459 + $0x30] sm:$0xff] %vm480, %v2802
        %2819 = vst.msk [vmem:[%s459 + $0x38] sm:$0xff] %vm480, %v2803
        %2820 = vst.msk [vmem:[%s459 + $0x40] sm:$0xff] %vm480, %v2804
        %2821 = vst.msk [vmem:[%s459 + $0x48] sm:$0xff] %vm480, %v2805
        %2822 = vst.msk [vmem:[%s459 + $0x50] sm:$0xff] %vm480, %v2806
        %2823 = vst.msk [vmem:[%s459 + $0x58] sm:$0xff] %vm480, %v2807
        %2824 = vst.msk [vmem:[%s459 + $0x60] sm:$0xff] %vm480, %v2808
        %2825 = vst.msk [vmem:[%s459 + $0x68] sm:$0xff] %vm480, %v2809
        %2826 = vst.msk [vmem:[%s459 + $0x70] sm:$0xff] %vm480, %v2810
        %2827 = vst.msk [vmem:[%s459 + $0x78] sm:$0xff] %vm480, %v2811
        %s2828 = sand.u32 %s316, 1
        %s2829 = scalar_lea.sflag [#allocation4], %s2828
        %s2830 = sand.u32 %s316, 1
        %s2831 = smul.addr %s2830, 128
        %s2832 = scalar_lea.vmem [#allocation5], %s2831
        // Predicated region
        $region77: #{tpu_custom_call.1} parent=71 // pred_check
          %p2833 = pneg %p326
        $region78: #{tpu_custom_call.1} parent=71 // pred_check_branch
          %2835 = sbr.rel (%p2833) target = $region80
        $region79: #{tpu_custom_call.1} parent=71 // pred_region
          %s2836 = smul.u32 8, %s30
          %s2838 = ssub.s32 2048, 2048
          %2839 = vsyncadd %s2829, %s2838
          %s2840 = smul.addr %s2836, 2
          %s2841 = smul.addr %s2840, 128
          %s2842 = scalar_lea.hbm %s13, %s2841
          %s2843 = sshll.u32 %s2832, 4
          %s2844 = int_to_ptr.vmem [resolvable:$true] %s2843
          %2849 = dma.vmem_to_hbm [thread:$0]  %s2844, 2048, %s2842, %s2829, 128, 128, 8
        $region80: #{tpu_custom_call.1} parent=71 // pred_fallthru
          _
      $region72: #{tpu_custom_call.1} parent=5 // pred_fallthru
        _
      %p2850 = scmp.le.s32.totalorder 2, %s25
      // Predicated region
      $region81: #{tpu_custom_call.1} parent=5 // pred_check
        %p2851 = pneg %p2850
      $region82: #{tpu_custom_call.1} parent=5 // pred_check_branch
        %2853 = sbr.rel (%p2851) target = $region84
      $region83: #{tpu_custom_call.1} parent=5 // pred_region
        %s2854 = ssub.s32 %s25, 2
        // Predicated region
        $region85: #{tpu_custom_call.1} parent=83 // pred_check
          %p2855 = pneg %p332
        $region86: #{tpu_custom_call.1} parent=83 // pred_check_branch
          %2857 = sbr.rel (%p2855) target = $region88
        $region87: #{tpu_custom_call.1} parent=83 // pred_region
          %s2858 = sand.u32 %s317, 1
          %s2859 = scalar_lea.sflag [#allocation4], %s2858
          %s2860 = sand.u32 %s317, 1
          %s2861 = smul.addr %s2860, 128
          %s2862 = scalar_lea.vmem [#allocation5], %s2861
          %2863 = dma.done %s2859, 2048
        $region88: #{tpu_custom_call.1} parent=83 // pred_fallthru
          _
      $region84: #{tpu_custom_call.1} parent=5 // pred_fallthru
        _
    $region6: #{tpu_custom_call.1} parent=1 // loop_footer
      %s29 = sadd.s32 1, %s25
    $region7: #{tpu_custom_call.1} parent=1 // loop_footer_branch
      %24 = sbr.rel target = $region3
    $region8: #{tpu_custom_call.1} parent=1 // loop_exit
      _
    %2864 = vsyncpa [#allocation3], 1
    %s2865 = scalar_lea.sflag [#allocation3], 1
    %2866 = vsyncpa %s2865, 1
    %2867 = vsyncpa [#allocation4], 1
    %s2868 = scalar_lea.sflag [#allocation4], 1
    %2869 = vsyncpa %s2868, 1

</llo_original>
